<compile_context>
chip_gen: v7x
topology: tpu7x:2x2x1
jax: 0.10.0
libtpu: 0.0.40
codegen_flags: <defaults>
</compile_context>

<pallas_src>
import functools

import jax
import jax.numpy as jnp
from jax.experimental import pallas as pl
from jax.experimental.pallas import tpu as pltpu


MODEL_DIM = 128   # nn.Embedding / Linear width (default model_dim in the module)
LN_EPS = 1e-5     # torch.nn.LayerNorm default eps


def _gelu_exact(x):
    # torch.nn.GELU() default: exact erf formulation
    return 0.5 * x * (1.0 + jax.lax.erf(x * 0.7071067811865476))


def _layernorm(x, w, b):
    mu = jnp.mean(x, axis=-1, keepdims=True)
    xc = x - mu
    var = jnp.mean(xc * xc, axis=-1, keepdims=True)
    return xc * jax.lax.rsqrt(var + LN_EPS) * w + b


def _mlp_kernel(u_ref, i_ref, vecs_ref, w_ref, b2_ref, o_ref):
    D = MODEL_DIM
    xu = u_ref[...].astype(jnp.float32)     # (TM, D)
    xi = i_ref[...].astype(jnp.float32)     # (TM, D)

    # packed small params: one (16, D) f32 slab
    vecs = vecs_ref[...]
    u_ln_w, u_ln_b, u_b = vecs[0:1], vecs[1:2], vecs[2:3]
    i_ln_w, i_ln_b, i_b = vecs[3:4], vecs[4:5], vecs[5:6]
    f1_ln_w_u, f1_ln_w_i = vecs[6:7], vecs[7:8]
    f1_ln_b_u, f1_ln_b_i = vecs[8:9], vecs[9:10]
    f_b1 = vecs[10:11]
    f2_ln_w, f2_ln_b = vecs[11:12], vecs[12:13]
    w2_row = vecs[13:14]                     # final Linear(D, 1) weight as a row

    # packed big weights: one (4D, D) f32 slab
    uW = w_ref[0:D, :]
    iW = w_ref[D:2 * D, :]
    W1u = w_ref[2 * D:3 * D, :]
    W1i = w_ref[3 * D:4 * D, :]

    # user_mlp / item_mlp: LayerNorm -> Linear -> GELU -> (Dropout = identity)
    hu = _gelu_exact(jnp.dot(_layernorm(xu, u_ln_w, u_ln_b), uW,
                             preferred_element_type=jnp.float32) + u_b)
    hi = _gelu_exact(jnp.dot(_layernorm(xi, i_ln_w, i_ln_b), iW,
                             preferred_element_type=jnp.float32) + i_b)

    # LayerNorm over concat([hu, hi], -1) fused — never materialize (TM, 2D)
    two_d = 2.0 * D
    mu = (jnp.sum(hu, -1, keepdims=True) + jnp.sum(hi, -1, keepdims=True)) / two_d
    du = hu - mu
    di = hi - mu
    var = (jnp.sum(du * du, -1, keepdims=True)
           + jnp.sum(di * di, -1, keepdims=True)) / two_d
    inv = jax.lax.rsqrt(var + LN_EPS)
    gu = du * inv * f1_ln_w_u + f1_ln_b_u
    gi = di * inv * f1_ln_w_i + f1_ln_b_i

    # Linear(2D, D) split into two (D, D) halves, then GELU
    h = (jnp.dot(gu, W1u, preferred_element_type=jnp.float32)
         + jnp.dot(gi, W1i, preferred_element_type=jnp.float32) + f_b1)
    h = _gelu_exact(h)

    # final LayerNorm(D) -> Linear(D, 1), computed as (1, D) x (TM, D)^T so the
    # per-row scalars land lane-dense as a (1, TM) row (unmasked stores).
    h = _layernorm(h, f2_ln_w, f2_ln_b)
    out = jax.lax.dot_general(w2_row, h, (((1,), (1,)), ((), ())),
                              preferred_element_type=jnp.float32) + b2_ref[...]
    o_ref[...] = out.astype(o_ref.dtype)


def _round_up(x, m):
    return (x + m - 1) // m * m


def mlp_model_forward(user_indices, item_indices, params, *, tm=512):
    """Pallas implementation of MLPModel.forward.

    user_indices: (B, 1) int32, item_indices: (B, N) int32
    returns: (B, N, 1) float32
    """
    B = user_indices.shape[0]
    N = item_indices.shape[1]
    D = MODEL_DIM
    M = B * N

    # row tile: multiple of 128 (lane-dense output blocks), capped so tiny inputs
    # do not over-pad; realistic M uses the full 512-row tile.
    tm_eff = min(max(128, (tm // 128) * 128), _round_up(M, 128))
    M_pad = _round_up(M, tm_eff)
    num_steps = M_pad // tm_eff

    # --- plain-JAX glue: index repeat + bf16 embedding gather, padded rows -----
    u_idx = jnp.broadcast_to(user_indices.astype(jnp.int32), (B, N)).reshape(-1)
    i_idx = item_indices.astype(jnp.int32).reshape(-1)
    if M_pad != M:
        pad = jnp.zeros((M_pad - M,), jnp.int32)
        u_idx = jnp.concatenate([u_idx, pad])
        i_idx = jnp.concatenate([i_idx, pad])
    u_emb = params["user_emb"][u_idx]       # (M_pad, D) bf16
    i_emb = params["item_emb"][i_idx]       # (M_pad, D) bf16
    # TODO(synk): user row is still gathered N times; a per-batch in-kernel gather
    # (scalar prefetch + manual DMA) would remove this duplication.

    # pack the 14 small (1, D) parameter vectors into one (16, D) slab
    vecs = jnp.concatenate([
        params["u_ln_w"], params["u_ln_b"], params["u_b"],
        params["i_ln_w"], params["i_ln_b"], params["i_b"],
        params["f1_ln_w"][:, :D], params["f1_ln_w"][:, D:],
        params["f1_ln_b"][:, :D], params["f1_ln_b"][:, D:],
        params["f_b1"],
        params["f2_ln_w"], params["f2_ln_b"],
        params["f_W2"].reshape(1, D),
        jnp.zeros((2, D), jnp.float32),
    ], axis=0).astype(jnp.float32)           # (16, D)

    # pack the big weights (f_W1 split in half) into one (4D, D) slab
    w_pack = jnp.concatenate([
        params["u_W"], params["i_W"],
        params["f_W1"][:D, :], params["f_W1"][D:, :],
    ], axis=0).astype(jnp.float32)           # (4D, D)

    row_spec = pl.BlockSpec((tm_eff, D), lambda m: (m, 0))
    const = lambda shape: pl.BlockSpec(shape, lambda m: (0, 0))

    out = pl.pallas_call(
        _mlp_kernel,
        out_shape=jax.ShapeDtypeStruct((1, M_pad), jnp.float32),
        grid_spec=pltpu.PrefetchScalarGridSpec(
            num_scalar_prefetch=0,
            grid=(num_steps,),
            in_specs=[row_spec, row_spec,
                      const((16, D)), const((4 * D, D)), const((1, 1))],
            out_specs=pl.BlockSpec((1, tm_eff), lambda m: (0, m)),
        ),
        compiler_params=pltpu.CompilerParams(
            dimension_semantics=("parallel",)),
    )(u_emb, i_emb, vecs, w_pack, params["f_b2"])

    return out[0, :M].reshape(B, N, 1)


def _reference_forward(user_indices, item_indices, params):
    """Pure-JAX reference (same math, no Pallas) for a sanity check."""
    B = user_indices.shape[0]
    N = item_indices.shape[1]
    u_idx = jnp.broadcast_to(user_indices, (B, N)).reshape(-1)
    i_idx = item_indices.reshape(-1)
    xu = params["user_emb"][u_idx].astype(jnp.float32)
    xi = params["item_emb"][i_idx].astype(jnp.float32)

    def mm(a, b):
        return jnp.dot(a, b, precision=jax.lax.Precision.HIGHEST)

    hu = _gelu_exact(mm(_layernorm(xu, params["u_ln_w"], params["u_ln_b"]),
                        params["u_W"]) + params["u_b"])
    hi = _gelu_exact(mm(_layernorm(xi, params["i_ln_w"], params["i_ln_b"]),
                        params["i_W"]) + params["i_b"])
    h = jnp.concatenate([hu, hi], axis=-1)
    h = _gelu_exact(mm(_layernorm(h, params["f1_ln_w"], params["f1_ln_b"]),
                       params["f_W1"]) + params["f_b1"])
    h = mm(_layernorm(h, params["f2_ln_w"], params["f2_ln_b"]),
           params["f_W2"]) + params["f_b2"]
    return h.reshape(B, N, 1)


def init_params(key, num_users, num_items, d=MODEL_DIM):
    """Deterministic synthetic init mirroring the torch module's shapes."""
    ks = jax.random.split(key, 12)

    def lin(kw, kb, fan_in, fan_out):
        # torch.nn.Linear default: U(-1/sqrt(fan_in), 1/sqrt(fan_in));
        # stored pre-transposed as (fan_in, fan_out) so the kernel does x @ W.
        lim = 1.0 / (fan_in ** 0.5)
        W = jax.random.uniform(kw, (fan_in, fan_out), jnp.float32, -lim, lim)
        b = jax.random.uniform(kb, (1, fan_out), jnp.float32, -lim, lim)
        return W, b

    u_W, u_b = lin(ks[2], ks[3], d, d)
    i_W, i_b = lin(ks[4], ks[5], d, d)
    f_W1, f_b1 = lin(ks[6], ks[7], 2 * d, d)
    f_W2, f_b2 = lin(ks[8], ks[9], d, 1)

    return {
        # embedding.weight.data.uniform_(-0.005, 0.005); stored bf16 to halve the
        # dominant HBM read of the gathered activations (kernel computes in f32)
        "user_emb": jax.random.uniform(ks[0], (num_users, d), jnp.float32,
                                       -0.005, 0.005).astype(jnp.bfloat16),
        "item_emb": jax.random.uniform(ks[1], (num_items, d), jnp.float32,
                                       -0.005, 0.005).astype(jnp.bfloat16),
        # LayerNorm default init: weight = 1, bias = 0 (kept 2D for lane layout)
        "u_ln_w": jnp.ones((1, d), jnp.float32), "u_ln_b": jnp.zeros((1, d), jnp.float32),
        "i_ln_w": jnp.ones((1, d), jnp.float32), "i_ln_b": jnp.zeros((1, d), jnp.float32),
        "f1_ln_w": jnp.ones((1, 2 * d), jnp.float32), "f1_ln_b": jnp.zeros((1, 2 * d), jnp.float32),
        "f2_ln_w": jnp.ones((1, d), jnp.float32), "f2_ln_b": jnp.zeros((1, d), jnp.float32),
        "u_W": u_W, "u_b": u_b,
        "i_W": i_W, "i_b": i_b,
        "f_W1": f_W1, "f_b1": f_b1,
        "f_W2": f_W2, "f_b2": f_b2,
    }


if __name__ == "__main__":
    key = jax.random.PRNGKey(0)
    num_users, num_items = 10, 20
    B, N = 2, 8

    pkey, ukey, ikey = jax.random.split(key, 3)
    params = init_params(pkey, num_users, num_items)

    user_indices = jax.random.randint(ukey, (B, 1), 0, num_users, dtype=jnp.int32)
    item_indices = jax.random.randint(ikey, (B, N), 0, num_items, dtype=jnp.int32)

    fwd = jax.jit(functools.partial(mlp_model_forward, params=params))
    out = fwd(user_indices, item_indices)
    jax.block_until_ready(out)

    ref = _reference_forward(user_indices, item_indices, params)
    assert out.shape == (B, N, 1), out.shape
    assert jnp.allclose(out, ref, atol=2e-4, rtol=2e-4), "kernel/ref mismatch"

    print("KERNEL_OK")
</pallas_src>

<mosaic_0001>
module attributes {stable_mosaic.version = 11 : i64} {
  func.func @_mlp_kernel(%arg0: i32, %arg1: memref<128x128xbf16, #tpu.memory_space<vmem>>, %arg2: memref<128x128xbf16, #tpu.memory_space<vmem>>, %arg3: memref<16x128xf32, #tpu.memory_space<vmem>>, %arg4: memref<512x128xf32, #tpu.memory_space<vmem>>, %arg5: memref<1x1xf32, #tpu.memory_space<vmem>>, %arg6: memref<1x128xf32, #tpu.memory_space<vmem>>) attributes {dimension_semantics = [#tpu.dimension_semantics<parallel>], iteration_bounds = array<i64: 1>, scalar_prefetch = 0 : i64, scratch_operands = 0 : i64, tpu.core_type = #tpu.core_type<tc>, window_params = [{transform_indices = @transform_0, window_bounds = array<i64: 128, 128>}, {transform_indices = @transform_1, window_bounds = array<i64: 128, 128>}, {pipeline_mode = #tpu.pipeline_mode<synchronous>, transform_indices = @transform_2, window_bounds = array<i64: 16, 128>}, {pipeline_mode = #tpu.pipeline_mode<synchronous>, transform_indices = @transform_3, window_bounds = array<i64: 512, 128>}, {pipeline_mode = #tpu.pipeline_mode<synchronous>, transform_indices = @transform_4, window_bounds = array<i64: 1, 1>}, {transform_indices = @transform_5, window_bounds = array<i64: 1, 128>}]} {
    %c0 = arith.constant 0 : index
    %c0_0 = arith.constant 0 : index
    %0 = vector.load %arg1[%c0, %c0_0] : memref<128x128xbf16, #tpu.memory_space<vmem>>, vector<128x128xbf16>
    %1 = arith.extf %0 : vector<128x128xbf16> to vector<128x128xf32>
    %c0_1 = arith.constant 0 : index
    %c0_2 = arith.constant 0 : index
    %2 = vector.load %arg2[%c0_1, %c0_2] : memref<128x128xbf16, #tpu.memory_space<vmem>>, vector<128x128xbf16>
    %3 = arith.extf %2 : vector<128x128xbf16> to vector<128x128xf32>
    %c0_3 = arith.constant 0 : index
    %c0_4 = arith.constant 0 : index
    %4 = vector.load %arg3[%c0_3, %c0_4] : memref<16x128xf32, #tpu.memory_space<vmem>>, vector<16x128xf32>
    %5 = vector.extract_strided_slice %4 {offsets = [0, 0], sizes = [1, 128], strides = [1, 1]} : vector<16x128xf32> to vector<1x128xf32>
    %6 = vector.extract_strided_slice %4 {offsets = [1, 0], sizes = [1, 128], strides = [1, 1]} : vector<16x128xf32> to vector<1x128xf32>
    %7 = vector.extract_strided_slice %4 {offsets = [2, 0], sizes = [1, 128], strides = [1, 1]} : vector<16x128xf32> to vector<1x128xf32>
    %8 = vector.extract_strided_slice %4 {offsets = [3, 0], sizes = [1, 128], strides = [1, 1]} : vector<16x128xf32> to vector<1x128xf32>
    %9 = vector.extract_strided_slice %4 {offsets = [4, 0], sizes = [1, 128], strides = [1, 1]} : vector<16x128xf32> to vector<1x128xf32>
    %10 = vector.extract_strided_slice %4 {offsets = [5, 0], sizes = [1, 128], strides = [1, 1]} : vector<16x128xf32> to vector<1x128xf32>
    %11 = vector.extract_strided_slice %4 {offsets = [6, 0], sizes = [1, 128], strides = [1, 1]} : vector<16x128xf32> to vector<1x128xf32>
    %12 = vector.extract_strided_slice %4 {offsets = [7, 0], sizes = [1, 128], strides = [1, 1]} : vector<16x128xf32> to vector<1x128xf32>
    %13 = vector.extract_strided_slice %4 {offsets = [8, 0], sizes = [1, 128], strides = [1, 1]} : vector<16x128xf32> to vector<1x128xf32>
    %14 = vector.extract_strided_slice %4 {offsets = [9, 0], sizes = [1, 128], strides = [1, 1]} : vector<16x128xf32> to vector<1x128xf32>
    %15 = vector.extract_strided_slice %4 {offsets = [10, 0], sizes = [1, 128], strides = [1, 1]} : vector<16x128xf32> to vector<1x128xf32>
    %16 = vector.extract_strided_slice %4 {offsets = [11, 0], sizes = [1, 128], strides = [1, 1]} : vector<16x128xf32> to vector<1x128xf32>
    %17 = vector.extract_strided_slice %4 {offsets = [12, 0], sizes = [1, 128], strides = [1, 1]} : vector<16x128xf32> to vector<1x128xf32>
    %18 = vector.extract_strided_slice %4 {offsets = [13, 0], sizes = [1, 128], strides = [1, 1]} : vector<16x128xf32> to vector<1x128xf32>
    %c0_5 = arith.constant 0 : index
    %c0_6 = arith.constant 0 : index
    %19 = vector.load %arg4[%c0_5, %c0_6] : memref<512x128xf32, #tpu.memory_space<vmem>>, vector<128x128xf32>
    %c128 = arith.constant 128 : index
    %c0_7 = arith.constant 0 : index
    %20 = vector.load %arg4[%c128, %c0_7] : memref<512x128xf32, #tpu.memory_space<vmem>>, vector<128x128xf32>
    %c256 = arith.constant 256 : index
    %c0_8 = arith.constant 0 : index
    %21 = vector.load %arg4[%c256, %c0_8] : memref<512x128xf32, #tpu.memory_space<vmem>>, vector<128x128xf32>
    %c384 = arith.constant 384 : index
    %c0_9 = arith.constant 0 : index
    %22 = vector.load %arg4[%c384, %c0_9] : memref<512x128xf32, #tpu.memory_space<vmem>>, vector<128x128xf32>
    %cst = arith.constant dense<0.000000e+00> : vector<128xf32>
    %23 = vector.multi_reduction <add>, %1, %cst [1] : vector<128x128xf32> to vector<128xf32>
    %24 = vector.shape_cast %23 : vector<128xf32> to vector<128x1xf32>
    %cst_10 = arith.constant 1.280000e+02 : f32
    %25 = vector.broadcast %cst_10 : f32 to vector<128x1xf32>
    %26 = arith.divf %24, %25 : vector<128x1xf32>
    %27 = vector.broadcast %26 : vector<128x1xf32> to vector<128x128xf32>
    %28 = arith.subf %1, %27 : vector<128x128xf32>
    %29 = arith.mulf %28, %28 : vector<128x128xf32>
    %cst_11 = arith.constant dense<0.000000e+00> : vector<128xf32>
    %30 = vector.multi_reduction <add>, %29, %cst_11 [1] : vector<128x128xf32> to vector<128xf32>
    %31 = vector.shape_cast %30 : vector<128xf32> to vector<128x1xf32>
    %cst_12 = arith.constant 1.280000e+02 : f32
    %32 = vector.broadcast %cst_12 : f32 to vector<128x1xf32>
    %33 = arith.divf %31, %32 : vector<128x1xf32>
    %cst_13 = arith.constant 9.99999974E-6 : f32
    %34 = vector.broadcast %cst_13 : f32 to vector<128x1xf32>
    %35 = arith.addf %33, %34 : vector<128x1xf32>
    %36 = math.rsqrt %35 : vector<128x1xf32>
    %37 = vector.broadcast %36 : vector<128x1xf32> to vector<128x128xf32>
    %38 = arith.mulf %28, %37 : vector<128x128xf32>
    %39 = vector.broadcast %5 : vector<1x128xf32> to vector<128x128xf32>
    %40 = arith.mulf %38, %39 : vector<128x128xf32>
    %41 = vector.broadcast %6 : vector<1x128xf32> to vector<128x128xf32>
    %42 = arith.addf %40, %41 : vector<128x128xf32>
    %cst_14 = arith.constant dense<0.000000e+00> : vector<128x128xf32>
    %43 = tpu.matmul %42, %19, %cst_14 {dimension_numbers = #tpu.dot_dimension_numbers<[1], [0], [0], [1], [0, 0, 1, 1], [], []>} : vector<128x128xf32>, vector<128x128xf32>, vector<128x128xf32> -> vector<128x128xf32>
    %44 = vector.broadcast %7 : vector<1x128xf32> to vector<128x128xf32>
    %45 = arith.addf %43, %44 : vector<128x128xf32>
    %cst_15 = arith.constant 5.000000e-01 : f32
    %46 = vector.broadcast %cst_15 : f32 to vector<128x128xf32>
    %47 = arith.mulf %46, %45 : vector<128x128xf32>
    %cst_16 = arith.constant 0.707106769 : f32
    %48 = vector.broadcast %cst_16 : f32 to vector<128x128xf32>
    %49 = arith.mulf %45, %48 : vector<128x128xf32>
    %50 = math.erf %49 : vector<128x128xf32>
    %cst_17 = arith.constant 1.000000e+00 : f32
    %51 = vector.broadcast %cst_17 : f32 to vector<128x128xf32>
    %52 = arith.addf %51, %50 : vector<128x128xf32>
    %53 = arith.mulf %47, %52 : vector<128x128xf32>
    %cst_18 = arith.constant dense<0.000000e+00> : vector<128xf32>
    %54 = vector.multi_reduction <add>, %3, %cst_18 [1] : vector<128x128xf32> to vector<128xf32>
    %55 = vector.shape_cast %54 : vector<128xf32> to vector<128x1xf32>
    %cst_19 = arith.constant 1.280000e+02 : f32
    %56 = vector.broadcast %cst_19 : f32 to vector<128x1xf32>
    %57 = arith.divf %55, %56 : vector<128x1xf32>
    %58 = vector.broadcast %57 : vector<128x1xf32> to vector<128x128xf32>
    %59 = arith.subf %3, %58 : vector<128x128xf32>
    %60 = arith.mulf %59, %59 : vector<128x128xf32>
    %cst_20 = arith.constant dense<0.000000e+00> : vector<128xf32>
    %61 = vector.multi_reduction <add>, %60, %cst_20 [1] : vector<128x128xf32> to vector<128xf32>
    %62 = vector.shape_cast %61 : vector<128xf32> to vector<128x1xf32>
    %cst_21 = arith.constant 1.280000e+02 : f32
    %63 = vector.broadcast %cst_21 : f32 to vector<128x1xf32>
    %64 = arith.divf %62, %63 : vector<128x1xf32>
    %cst_22 = arith.constant 9.99999974E-6 : f32
    %65 = vector.broadcast %cst_22 : f32 to vector<128x1xf32>
    %66 = arith.addf %64, %65 : vector<128x1xf32>
    %67 = math.rsqrt %66 : vector<128x1xf32>
    %68 = vector.broadcast %67 : vector<128x1xf32> to vector<128x128xf32>
    %69 = arith.mulf %59, %68 : vector<128x128xf32>
    %70 = vector.broadcast %8 : vector<1x128xf32> to vector<128x128xf32>
    %71 = arith.mulf %69, %70 : vector<128x128xf32>
    %72 = vector.broadcast %9 : vector<1x128xf32> to vector<128x128xf32>
    %73 = arith.addf %71, %72 : vector<128x128xf32>
    %cst_23 = arith.constant dense<0.000000e+00> : vector<128x128xf32>
    %74 = tpu.matmul %73, %20, %cst_23 {dimension_numbers = #tpu.dot_dimension_numbers<[1], [0], [0], [1], [0, 0, 1, 1], [], []>} : vector<128x128xf32>, vector<128x128xf32>, vector<128x128xf32> -> vector<128x128xf32>
    %75 = vector.broadcast %10 : vector<1x128xf32> to vector<128x128xf32>
    %76 = arith.addf %74, %75 : vector<128x128xf32>
    %cst_24 = arith.constant 5.000000e-01 : f32
    %77 = vector.broadcast %cst_24 : f32 to vector<128x128xf32>
    %78 = arith.mulf %77, %76 : vector<128x128xf32>
    %cst_25 = arith.constant 0.707106769 : f32
    %79 = vector.broadcast %cst_25 : f32 to vector<128x128xf32>
    %80 = arith.mulf %76, %79 : vector<128x128xf32>
    %81 = math.erf %80 : vector<128x128xf32>
    %cst_26 = arith.constant 1.000000e+00 : f32
    %82 = vector.broadcast %cst_26 : f32 to vector<128x128xf32>
    %83 = arith.addf %82, %81 : vector<128x128xf32>
    %84 = arith.mulf %78, %83 : vector<128x128xf32>
    %cst_27 = arith.constant dense<0.000000e+00> : vector<128xf32>
    %85 = vector.multi_reduction <add>, %53, %cst_27 [1] : vector<128x128xf32> to vector<128xf32>
    %86 = vector.shape_cast %85 : vector<128xf32> to vector<128x1xf32>
    %cst_28 = arith.constant dense<0.000000e+00> : vector<128xf32>
    %87 = vector.multi_reduction <add>, %84, %cst_28 [1] : vector<128x128xf32> to vector<128xf32>
    %88 = vector.shape_cast %87 : vector<128xf32> to vector<128x1xf32>
    %89 = arith.addf %86, %88 : vector<128x1xf32>
    %cst_29 = arith.constant 2.560000e+02 : f32
    %90 = vector.broadcast %cst_29 : f32 to vector<128x1xf32>
    %91 = arith.divf %89, %90 : vector<128x1xf32>
    %92 = vector.broadcast %91 : vector<128x1xf32> to vector<128x128xf32>
    %93 = arith.subf %53, %92 : vector<128x128xf32>
    %94 = vector.broadcast %91 : vector<128x1xf32> to vector<128x128xf32>
    %95 = arith.subf %84, %94 : vector<128x128xf32>
    %96 = arith.mulf %93, %93 : vector<128x128xf32>
    %cst_30 = arith.constant dense<0.000000e+00> : vector<128xf32>
    %97 = vector.multi_reduction <add>, %96, %cst_30 [1] : vector<128x128xf32> to vector<128xf32>
    %98 = vector.shape_cast %97 : vector<128xf32> to vector<128x1xf32>
    %99 = arith.mulf %95, %95 : vector<128x128xf32>
    %cst_31 = arith.constant dense<0.000000e+00> : vector<128xf32>
    %100 = vector.multi_reduction <add>, %99, %cst_31 [1] : vector<128x128xf32> to vector<128xf32>
    %101 = vector.shape_cast %100 : vector<128xf32> to vector<128x1xf32>
    %102 = arith.addf %98, %101 : vector<128x1xf32>
    %cst_32 = arith.constant 2.560000e+02 : f32
    %103 = vector.broadcast %cst_32 : f32 to vector<128x1xf32>
    %104 = arith.divf %102, %103 : vector<128x1xf32>
    %cst_33 = arith.constant 9.99999974E-6 : f32
    %105 = vector.broadcast %cst_33 : f32 to vector<128x1xf32>
    %106 = arith.addf %104, %105 : vector<128x1xf32>
    %107 = math.rsqrt %106 : vector<128x1xf32>
    %108 = vector.broadcast %107 : vector<128x1xf32> to vector<128x128xf32>
    %109 = arith.mulf %93, %108 : vector<128x128xf32>
    %110 = vector.broadcast %11 : vector<1x128xf32> to vector<128x128xf32>
    %111 = arith.mulf %109, %110 : vector<128x128xf32>
    %112 = vector.broadcast %13 : vector<1x128xf32> to vector<128x128xf32>
    %113 = arith.addf %111, %112 : vector<128x128xf32>
    %114 = vector.broadcast %107 : vector<128x1xf32> to vector<128x128xf32>
    %115 = arith.mulf %95, %114 : vector<128x128xf32>
    %116 = vector.broadcast %12 : vector<1x128xf32> to vector<128x128xf32>
    %117 = arith.mulf %115, %116 : vector<128x128xf32>
    %118 = vector.broadcast %14 : vector<1x128xf32> to vector<128x128xf32>
    %119 = arith.addf %117, %118 : vector<128x128xf32>
    %cst_34 = arith.constant dense<0.000000e+00> : vector<128x128xf32>
    %120 = tpu.matmul %113, %21, %cst_34 {dimension_numbers = #tpu.dot_dimension_numbers<[1], [0], [0], [1], [0, 0, 1, 1], [], []>} : vector<128x128xf32>, vector<128x128xf32>, vector<128x128xf32> -> vector<128x128xf32>
    %cst_35 = arith.constant dense<0.000000e+00> : vector<128x128xf32>
    %121 = tpu.matmul %119, %22, %cst_35 {dimension_numbers = #tpu.dot_dimension_numbers<[1], [0], [0], [1], [0, 0, 1, 1], [], []>} : vector<128x128xf32>, vector<128x128xf32>, vector<128x128xf32> -> vector<128x128xf32>
    %122 = arith.addf %120, %121 : vector<128x128xf32>
    %123 = vector.broadcast %15 : vector<1x128xf32> to vector<128x128xf32>
    %124 = arith.addf %122, %123 : vector<128x128xf32>
    %cst_36 = arith.constant 5.000000e-01 : f32
    %125 = vector.broadcast %cst_36 : f32 to vector<128x128xf32>
    %126 = arith.mulf %125, %124 : vector<128x128xf32>
    %cst_37 = arith.constant 0.707106769 : f32
    %127 = vector.broadcast %cst_37 : f32 to vector<128x128xf32>
    %128 = arith.mulf %124, %127 : vector<128x128xf32>
    %129 = math.erf %128 : vector<128x128xf32>
    %cst_38 = arith.constant 1.000000e+00 : f32
    %130 = vector.broadcast %cst_38 : f32 to vector<128x128xf32>
    %131 = arith.addf %130, %129 : vector<128x128xf32>
    %132 = arith.mulf %126, %131 : vector<128x128xf32>
    %cst_39 = arith.constant dense<0.000000e+00> : vector<128xf32>
    %133 = vector.multi_reduction <add>, %132, %cst_39 [1] : vector<128x128xf32> to vector<128xf32>
    %134 = vector.shape_cast %133 : vector<128xf32> to vector<128x1xf32>
    %cst_40 = arith.constant 1.280000e+02 : f32
    %135 = vector.broadcast %cst_40 : f32 to vector<128x1xf32>
    %136 = arith.divf %134, %135 : vector<128x1xf32>
    %137 = vector.broadcast %136 : vector<128x1xf32> to vector<128x128xf32>
    %138 = arith.subf %132, %137 : vector<128x128xf32>
    %139 = arith.mulf %138, %138 : vector<128x128xf32>
    %cst_41 = arith.constant dense<0.000000e+00> : vector<128xf32>
    %140 = vector.multi_reduction <add>, %139, %cst_41 [1] : vector<128x128xf32> to vector<128xf32>
    %141 = vector.shape_cast %140 : vector<128xf32> to vector<128x1xf32>
    %cst_42 = arith.constant 1.280000e+02 : f32
    %142 = vector.broadcast %cst_42 : f32 to vector<128x1xf32>
    %143 = arith.divf %141, %142 : vector<128x1xf32>
    %cst_43 = arith.constant 9.99999974E-6 : f32
    %144 = vector.broadcast %cst_43 : f32 to vector<128x1xf32>
    %145 = arith.addf %143, %144 : vector<128x1xf32>
    %146 = math.rsqrt %145 : vector<128x1xf32>
    %147 = vector.broadcast %146 : vector<128x1xf32> to vector<128x128xf32>
    %148 = arith.mulf %138, %147 : vector<128x128xf32>
    %149 = vector.broadcast %16 : vector<1x128xf32> to vector<128x128xf32>
    %150 = arith.mulf %148, %149 : vector<128x128xf32>
    %151 = vector.broadcast %17 : vector<1x128xf32> to vector<128x128xf32>
    %152 = arith.addf %150, %151 : vector<128x128xf32>
    %cst_44 = arith.constant dense<0.000000e+00> : vector<1x128xf32>
    %153 = tpu.matmul %18, %152, %cst_44 {dimension_numbers = #tpu.dot_dimension_numbers<[1], [1], [0], [0], [0, 0, 1, 0], [], []>} : vector<1x128xf32>, vector<128x128xf32>, vector<1x128xf32> -> vector<1x128xf32>
    %c0_45 = arith.constant 0 : index
    %c0_46 = arith.constant 0 : index
    %154 = vector.load %arg5[%c0_45, %c0_46] : memref<1x1xf32, #tpu.memory_space<vmem>>, vector<1x1xf32>
    %155 = vector.broadcast %154 : vector<1x1xf32> to vector<1x128xf32>
    %156 = arith.addf %153, %155 : vector<1x128xf32>
    %c0_47 = arith.constant 0 : index
    %c0_48 = arith.constant 0 : index
    %157 = vector.load %arg6[%c0_47, %c0_48] : memref<1x128xf32, #tpu.memory_space<vmem>>, vector<1x128xf32>
    tpu.vector_store %arg6[%c0_47, %c0_48], %156 {strides = array<i32>} : memref<1x128xf32, #tpu.memory_space<vmem>>, vector<1x128xf32>,
    return
  }
  func.func @transform_0(%arg0: i32) -> (i32, i32) {
    %c0_i32 = arith.constant 0 : i32
    %c0_i32_0 = arith.constant 0 : i32
    return %arg0, %c0_i32 : i32, i32
  }
  func.func @transform_1(%arg0: i32) -> (i32, i32) {
    %c0_i32 = arith.constant 0 : i32
    %c0_i32_0 = arith.constant 0 : i32
    return %arg0, %c0_i32 : i32, i32
  }
  func.func @transform_2(%arg0: i32) -> (i32, i32) {
    %c0_i32 = arith.constant 0 : i32
    %c0_i32_0 = arith.constant 0 : i32
    %c0_i32_1 = arith.constant 0 : i32
    return %c0_i32, %c0_i32_0 : i32, i32
  }
  func.func @transform_3(%arg0: i32) -> (i32, i32) {
    %c0_i32 = arith.constant 0 : i32
    %c0_i32_0 = arith.constant 0 : i32
    %c0_i32_1 = arith.constant 0 : i32
    return %c0_i32, %c0_i32_0 : i32, i32
  }
  func.func @transform_4(%arg0: i32) -> (i32, i32) {
    %c0_i32 = arith.constant 0 : i32
    %c0_i32_0 = arith.constant 0 : i32
    %c0_i32_1 = arith.constant 0 : i32
    return %c0_i32, %c0_i32_0 : i32, i32
  }
  func.func @transform_5(%arg0: i32) -> (i32, i32) {
    %c0_i32 = arith.constant 0 : i32
    %c0_i32_0 = arith.constant 0 : i32
    return %c0_i32, %arg0 : i32, i32
  }
}

</mosaic_0001>

<llo_original>
// kernel: squeeze.1
$region0: #{squeeze.1}
  %s0 = inlined_call_operand.vmem [shape: f32[16], index: 0, kind: input, shape index: {}]
  %s1 = inlined_call_operand.hbm [shape: f32[2,8,1], index: 1, kind: output, shape index: {}]
  $region1: #{squeeze.1} parent=0
    #allocation0 [shape = 'u8[1024]{0}', space=vmem, size = 0x400, scoped, tag = 'operand span for operand 1']
    #allocation1 [shape = 's32[1]{0}', space=sflag, size = 0x4, scoped, tag = 'scoped memory for squeeze.1']
    #allocation2 [shape = 'u8[4096]{0}', space=vmem, size = 0x1000, scoped, tag = 'scoped mem for output reshape']
    #allocation3 [shape = 'u8[4096]{0}', space=vmem, size = 0x1000, scoped, tag = 'scoped mem for input reshape']
    %2 = vsyncpa [#allocation1], 0
    %s4 = sshllo.u32 0, 1
    %v5 = vld [vmem:[%s0] sm:%s4]
    %6 = vst [vmem:[#allocation3] sm:%s4] %v5
    %v7 = vld [vmem:[#allocation3] sm:$0x1]
    %vm8 = vcmask 64512
    %9 = vst.msk [vmem:[#allocation2] sm:$0x1] %vm8, %v7
    %v10 = vld [vmem:[#allocation3] sm:$0x1]
    %11 = vrot.lane.b32.xlu0 %v10, 120
    %v12 = vpop.permute.xlu0 %11
    %vm13 = vcmask 64512
    %s14 = scalar_lea.vmem [#allocation2], 1
    %15 = vst.msk [vmem:[%s14] sm:$0x1] %vm13, %v12
    %s17 = sshllo.u32 0, 2
    %v19 = vld [vmem:[#allocation2] sm:%s17]
    %s20 = sshllo.u32 0, 2
    %21 = vst [vmem:[#allocation0] sm:%s20] %v19
    %s23 = ssub.s32 32, 32
    %24 = vsyncadd [#allocation1], %s23
    %s26 = sshll.u32 [#allocation0], 4
    %s27 = int_to_ptr.vmem [resolvable:$true] %s26
    %29 = dma.vmem_to_hbm [thread:$0]  %s27, 32, %s1, [#allocation1]
    %30 = dma.done [#allocation1], 32
    %31 = vsyncpa [#allocation1], 1

// kernel: mlp_model_forward.1
$region0: #{mlp_model_forward.1}
  #allocation0 [shape = 'u32[]', space=smem, size = 0x4, offset = 0x4, fixed_abs, tag = 'smem constant byte address 0x4 - core index']
  #allocation1 [shape = 'u32[144,128]{1,0:T(1,128)}', space=vmem, size = 0x12000, scoped, tag = 'internal scratch']
  #allocation2 [shape = 'f32[1,1]{1,0:T(1,128)S(1)}', space=vmem, size = 0x200, scoped, tag = 'scoped memory for mlp_model_forward.1']
  %s0 = inlined_call_operand.vmem [shape: bf16[128,128], index: 0, kind: input, shape index: {}]
  %s1 = inlined_call_operand.vmem [shape: bf16[128,128], index: 1, kind: input, shape index: {}]
  %s2 = inlined_call_operand.vmem [shape: f32[16,128], index: 2, kind: input, shape index: {}]
  %s3 = inlined_call_operand.vmem [shape: f32[512,128], index: 3, kind: input, shape index: {}]
  %s4 = inlined_call_operand.<no memory space> [shape: f32[1,1], index: 4, kind: input, shape index: {}]
  %s5 = inlined_call_operand.vmem [shape: f32[1,128], index: 5, kind: output, shape index: {}]
  %s6 = sld [smem:[#allocation0]]
  $region30: #{mlp_model_forward.1} parent=0
    _
  %s8 = ssub.s32 1, %s6
  %s9 = scalar_select 0, %s8, %s6
  %v10 = vstv %s4
  %11 = vst [vmem:[#allocation2] sm:$0x1] %v10
  // Predicated region
  $region2: #{mlp_model_forward.1} parent=0 // pred_check
    _
  $region3: #{mlp_model_forward.1} parent=0 // pred_check_branch
    %13 = sbr.rel (0) target = $region5
  $region4: #{mlp_model_forward.1} parent=0 // pred_region
    _
  $region5: #{mlp_model_forward.1} parent=0 // pred_fallthru
    _
  // Predicated region
  $region6: #{mlp_model_forward.1} parent=0 // pred_check
    _
  $region7: #{mlp_model_forward.1} parent=0 // pred_check_branch
    %15 = sbr.rel (0) target = $region9
  $region8: #{mlp_model_forward.1} parent=0 // pred_region
    _
  $region9: #{mlp_model_forward.1} parent=0 // pred_fallthru
    _
  // Predicated region
  $region10: #{mlp_model_forward.1} parent=0 // pred_check
    _
  $region11: #{mlp_model_forward.1} parent=0 // pred_check_branch
    %17 = sbr.rel (0) target = $region13
  $region12: #{mlp_model_forward.1} parent=0 // pred_region
    _
  $region13: #{mlp_model_forward.1} parent=0 // pred_fallthru
    _
  // Predicated region
  $region14: #{mlp_model_forward.1} parent=0 // pred_check
    _
  $region15: #{mlp_model_forward.1} parent=0 // pred_check_branch
    %19 = sbr.rel (0) target = $region17
  $region16: #{mlp_model_forward.1} parent=0 // pred_region
    _
  $region17: #{mlp_model_forward.1} parent=0 // pred_fallthru
    _
  // Predicated region
  $region18: #{mlp_model_forward.1} parent=0 // pred_check
    _
  $region19: #{mlp_model_forward.1} parent=0 // pred_check_branch
    %21 = sbr.rel (0) target = $region21
  $region20: #{mlp_model_forward.1} parent=0 // pred_region
    _
  $region21: #{mlp_model_forward.1} parent=0 // pred_fallthru
    _
  %v22 = vld [vmem:[%s0] sm:$0xf]
  %v23 = vld [vmem:[%s0 + $0x4] sm:$0xf]
  %v24 = vld [vmem:[%s0 + $0x8] sm:$0xf]
  %v25 = vld [vmem:[%s0 + $0xc] sm:$0xf]
  %v26 = vld [vmem:[%s0 + $0x10] sm:$0xf]
  %v27 = vld [vmem:[%s0 + $0x14] sm:$0xf]
  %v28 = vld [vmem:[%s0 + $0x18] sm:$0xf]
  %v29 = vld [vmem:[%s0 + $0x1c] sm:$0xf]
  %v30 = vld [vmem:[%s0 + $0x20] sm:$0xf]
  %v31 = vld [vmem:[%s0 + $0x24] sm:$0xf]
  %v32 = vld [vmem:[%s0 + $0x28] sm:$0xf]
  %v33 = vld [vmem:[%s0 + $0x2c] sm:$0xf]
  %v34 = vld [vmem:[%s0 + $0x30] sm:$0xf]
  %v35 = vld [vmem:[%s0 + $0x34] sm:$0xf]
  %v36 = vld [vmem:[%s0 + $0x38] sm:$0xf]
  %v37 = vld [vmem:[%s0 + $0x3c] sm:$0xf]
  %v38 = vunpack.c.l.bf16 %v22
  %v39 = vunpack.c.l.bf16 %v23
  %v40 = vunpack.c.l.bf16 %v24
  %v41 = vunpack.c.l.bf16 %v25
  %v42 = vunpack.c.l.bf16 %v26
  %v43 = vunpack.c.l.bf16 %v27
  %v44 = vunpack.c.l.bf16 %v28
  %v45 = vunpack.c.l.bf16 %v29
  %v46 = vunpack.c.l.bf16 %v30
  %v47 = vunpack.c.l.bf16 %v31
  %v48 = vunpack.c.l.bf16 %v32
  %v49 = vunpack.c.l.bf16 %v33
  %v50 = vunpack.c.l.bf16 %v34
  %v51 = vunpack.c.l.bf16 %v35
  %v52 = vunpack.c.l.bf16 %v36
  %v53 = vunpack.c.l.bf16 %v37
  %v54 = vld [vmem:[%s1] sm:$0xf]
  %v55 = vld [vmem:[%s1 + $0x4] sm:$0xf]
  %v56 = vld [vmem:[%s1 + $0x8] sm:$0xf]
  %v57 = vld [vmem:[%s1 + $0xc] sm:$0xf]
  %v58 = vld [vmem:[%s1 + $0x10] sm:$0xf]
  %v59 = vld [vmem:[%s1 + $0x14] sm:$0xf]
  %v60 = vld [vmem:[%s1 + $0x18] sm:$0xf]
  %v61 = vld [vmem:[%s1 + $0x1c] sm:$0xf]
  %v62 = vld [vmem:[%s1 + $0x20] sm:$0xf]
  %v63 = vld [vmem:[%s1 + $0x24] sm:$0xf]
  %v64 = vld [vmem:[%s1 + $0x28] sm:$0xf]
  %v65 = vld [vmem:[%s1 + $0x2c] sm:$0xf]
  %v66 = vld [vmem:[%s1 + $0x30] sm:$0xf]
  %v67 = vld [vmem:[%s1 + $0x34] sm:$0xf]
  %v68 = vld [vmem:[%s1 + $0x38] sm:$0xf]
  %v69 = vld [vmem:[%s1 + $0x3c] sm:$0xf]
  %v70 = vunpack.c.l.bf16 %v54
  %v71 = vunpack.c.l.bf16 %v55
  %v72 = vunpack.c.l.bf16 %v56
  %v73 = vunpack.c.l.bf16 %v57
  %v74 = vunpack.c.l.bf16 %v58
  %v75 = vunpack.c.l.bf16 %v59
  %v76 = vunpack.c.l.bf16 %v60
  %v77 = vunpack.c.l.bf16 %v61
  %v78 = vunpack.c.l.bf16 %v62
  %v79 = vunpack.c.l.bf16 %v63
  %v80 = vunpack.c.l.bf16 %v64
  %v81 = vunpack.c.l.bf16 %v65
  %v82 = vunpack.c.l.bf16 %v66
  %v83 = vunpack.c.l.bf16 %v67
  %v84 = vunpack.c.l.bf16 %v68
  %v85 = vunpack.c.l.bf16 %v69
  %v86 = vld [vmem:[%s2] sm:$0xff]
  %v87 = vld [vmem:[%s2 + $0x8] sm:$0xff]
  %v88 = vld [vmem:[%s3] sm:$0xff]
  %v89 = vld [vmem:[%s3 + $0x8] sm:$0xff]
  %v90 = vld [vmem:[%s3 + $0x10] sm:$0xff]
  %v91 = vld [vmem:[%s3 + $0x18] sm:$0xff]
  %v92 = vld [vmem:[%s3 + $0x20] sm:$0xff]
  %v93 = vld [vmem:[%s3 + $0x28] sm:$0xff]
  %v94 = vld [vmem:[%s3 + $0x30] sm:$0xff]
  %v95 = vld [vmem:[%s3 + $0x38] sm:$0xff]
  %v96 = vld [vmem:[%s3 + $0x40] sm:$0xff]
  %v97 = vld [vmem:[%s3 + $0x48] sm:$0xff]
  %v98 = vld [vmem:[%s3 + $0x50] sm:$0xff]
  %v99 = vld [vmem:[%s3 + $0x58] sm:$0xff]
  %v100 = vld [vmem:[%s3 + $0x60] sm:$0xff]
  %v101 = vld [vmem:[%s3 + $0x68] sm:$0xff]
  %v102 = vld [vmem:[%s3 + $0x70] sm:$0xff]
  %v103 = vld [vmem:[%s3 + $0x78] sm:$0xff]
  %v104 = vld [vmem:[%s3 + $0x80] sm:$0xff]
  %v105 = vld [vmem:[%s3 + $0x88] sm:$0xff]
  %v106 = vld [vmem:[%s3 + $0x90] sm:$0xff]
  %v107 = vld [vmem:[%s3 + $0x98] sm:$0xff]
  %v108 = vld [vmem:[%s3 + $0xa0] sm:$0xff]
  %v109 = vld [vmem:[%s3 + $0xa8] sm:$0xff]
  %v110 = vld [vmem:[%s3 + $0xb0] sm:$0xff]
  %v111 = vld [vmem:[%s3 + $0xb8] sm:$0xff]
  %v112 = vld [vmem:[%s3 + $0xc0] sm:$0xff]
  %v113 = vld [vmem:[%s3 + $0xc8] sm:$0xff]
  %v114 = vld [vmem:[%s3 + $0xd0] sm:$0xff]
  %v115 = vld [vmem:[%s3 + $0xd8] sm:$0xff]
  %v116 = vld [vmem:[%s3 + $0xe0] sm:$0xff]
  %v117 = vld [vmem:[%s3 + $0xe8] sm:$0xff]
  %v118 = vld [vmem:[%s3 + $0xf0] sm:$0xff]
  %v119 = vld [vmem:[%s3 + $0xf8] sm:$0xff]
  %v120 = vld [vmem:[%s3 + $0x100] sm:$0xff]
  %v121 = vld [vmem:[%s3 + $0x108] sm:$0xff]
  %v122 = vld [vmem:[%s3 + $0x110] sm:$0xff]
  %v123 = vld [vmem:[%s3 + $0x118] sm:$0xff]
  %v124 = vld [vmem:[%s3 + $0x120] sm:$0xff]
  %v125 = vld [vmem:[%s3 + $0x128] sm:$0xff]
  %v126 = vld [vmem:[%s3 + $0x130] sm:$0xff]
  %v127 = vld [vmem:[%s3 + $0x138] sm:$0xff]
  %v128 = vld [vmem:[%s3 + $0x140] sm:$0xff]
  %v129 = vld [vmem:[%s3 + $0x148] sm:$0xff]
  %v130 = vld [vmem:[%s3 + $0x150] sm:$0xff]
  %v131 = vld [vmem:[%s3 + $0x158] sm:$0xff]
  %v132 = vld [vmem:[%s3 + $0x160] sm:$0xff]
  %v133 = vld [vmem:[%s3 + $0x168] sm:$0xff]
  %v134 = vld [vmem:[%s3 + $0x170] sm:$0xff]
  %v135 = vld [vmem:[%s3 + $0x178] sm:$0xff]
  %v136 = vld [vmem:[%s3 + $0x180] sm:$0xff]
  %v137 = vld [vmem:[%s3 + $0x188] sm:$0xff]
  %v138 = vld [vmem:[%s3 + $0x190] sm:$0xff]
  %v139 = vld [vmem:[%s3 + $0x198] sm:$0xff]
  %v140 = vld [vmem:[%s3 + $0x1a0] sm:$0xff]
  %v141 = vld [vmem:[%s3 + $0x1a8] sm:$0xff]
  %v142 = vld [vmem:[%s3 + $0x1b0] sm:$0xff]
  %v143 = vld [vmem:[%s3 + $0x1b8] sm:$0xff]
  %v144 = vld [vmem:[%s3 + $0x1c0] sm:$0xff]
  %v145 = vld [vmem:[%s3 + $0x1c8] sm:$0xff]
  %v146 = vld [vmem:[%s3 + $0x1d0] sm:$0xff]
  %v147 = vld [vmem:[%s3 + $0x1d8] sm:$0xff]
  %v148 = vld [vmem:[%s3 + $0x1e0] sm:$0xff]
  %v149 = vld [vmem:[%s3 + $0x1e8] sm:$0xff]
  %v150 = vld [vmem:[%s3 + $0x1f0] sm:$0xff]
  %v151 = vld [vmem:[%s3 + $0x1f8] sm:$0xff]
  %152 = vadd.xlane.f32.xlu0 %v38
  %v153 = vpop.xlane.xlu0 %152
  %154 = vadd.xlane.f32.xlu0 %v39
  %v155 = vpop.xlane.xlu0 %154
  %156 = vadd.xlane.f32.xlu0 %v40
  %v157 = vpop.xlane.xlu0 %156
  %158 = vadd.xlane.f32.xlu0 %v41
  %v159 = vpop.xlane.xlu0 %158
  %160 = vadd.xlane.f32.xlu0 %v42
  %v161 = vpop.xlane.xlu0 %160
  %162 = vadd.xlane.f32.xlu0 %v43
  %v163 = vpop.xlane.xlu0 %162
  %164 = vadd.xlane.f32.xlu0 %v44
  %v165 = vpop.xlane.xlu0 %164
  %166 = vadd.xlane.f32.xlu0 %v45
  %v167 = vpop.xlane.xlu0 %166
  %168 = vadd.xlane.f32.xlu0 %v46
  %v169 = vpop.xlane.xlu0 %168
  %170 = vadd.xlane.f32.xlu0 %v47
  %v171 = vpop.xlane.xlu0 %170
  %172 = vadd.xlane.f32.xlu0 %v48
  %v173 = vpop.xlane.xlu0 %172
  %174 = vadd.xlane.f32.xlu0 %v49
  %v175 = vpop.xlane.xlu0 %174
  %176 = vadd.xlane.f32.xlu0 %v50
  %v177 = vpop.xlane.xlu0 %176
  %178 = vadd.xlane.f32.xlu0 %v51
  %v179 = vpop.xlane.xlu0 %178
  %180 = vadd.xlane.f32.xlu0 %v52
  %v181 = vpop.xlane.xlu0 %180
  %182 = vadd.xlane.f32.xlu0 %v53
  %v183 = vpop.xlane.xlu0 %182
  %v184 = vrcp.pop 128.0
  %v185 = vmul.f32 %v153, %v184
  %v186 = vmul.f32 %v155, %v184
  %v187 = vmul.f32 %v157, %v184
  %v188 = vmul.f32 %v159, %v184
  %v189 = vmul.f32 %v161, %v184
  %v190 = vmul.f32 %v163, %v184
  %v191 = vmul.f32 %v165, %v184
  %v192 = vmul.f32 %v167, %v184
  %v193 = vmul.f32 %v169, %v184
  %v194 = vmul.f32 %v171, %v184
  %v195 = vmul.f32 %v173, %v184
  %v196 = vmul.f32 %v175, %v184
  %v197 = vmul.f32 %v177, %v184
  %v198 = vmul.f32 %v179, %v184
  %v199 = vmul.f32 %v181, %v184
  %v200 = vmul.f32 %v183, %v184
  %v201 = vsub.f32 %v38, %v185
  %v202 = vsub.f32 %v39, %v186
  %v203 = vsub.f32 %v40, %v187
  %v204 = vsub.f32 %v41, %v188
  %v205 = vsub.f32 %v42, %v189
  %v206 = vsub.f32 %v43, %v190
  %v207 = vsub.f32 %v44, %v191
  %v208 = vsub.f32 %v45, %v192
  %v209 = vsub.f32 %v46, %v193
  %v210 = vsub.f32 %v47, %v194
  %v211 = vsub.f32 %v48, %v195
  %v212 = vsub.f32 %v49, %v196
  %v213 = vsub.f32 %v50, %v197
  %v214 = vsub.f32 %v51, %v198
  %v215 = vsub.f32 %v52, %v199
  %v216 = vsub.f32 %v53, %v200
  %v217 = vmul.f32 %v201, %v201
  %v218 = vmul.f32 %v202, %v202
  %v219 = vmul.f32 %v203, %v203
  %v220 = vmul.f32 %v204, %v204
  %v221 = vmul.f32 %v205, %v205
  %v222 = vmul.f32 %v206, %v206
  %v223 = vmul.f32 %v207, %v207
  %v224 = vmul.f32 %v208, %v208
  %v225 = vmul.f32 %v209, %v209
  %v226 = vmul.f32 %v210, %v210
  %v227 = vmul.f32 %v211, %v211
  %v228 = vmul.f32 %v212, %v212
  %v229 = vmul.f32 %v213, %v213
  %v230 = vmul.f32 %v214, %v214
  %v231 = vmul.f32 %v215, %v215
  %v232 = vmul.f32 %v216, %v216
  %233 = vadd.xlane.f32.xlu0 %v217
  %v234 = vpop.xlane.xlu0 %233
  %235 = vadd.xlane.f32.xlu0 %v218
  %v236 = vpop.xlane.xlu0 %235
  %237 = vadd.xlane.f32.xlu0 %v219
  %v238 = vpop.xlane.xlu0 %237
  %239 = vadd.xlane.f32.xlu0 %v220
  %v240 = vpop.xlane.xlu0 %239
  %241 = vadd.xlane.f32.xlu0 %v221
  %v242 = vpop.xlane.xlu0 %241
  %243 = vadd.xlane.f32.xlu0 %v222
  %v244 = vpop.xlane.xlu0 %243
  %245 = vadd.xlane.f32.xlu0 %v223
  %v246 = vpop.xlane.xlu0 %245
  %247 = vadd.xlane.f32.xlu0 %v224
  %v248 = vpop.xlane.xlu0 %247
  %249 = vadd.xlane.f32.xlu0 %v225
  %v250 = vpop.xlane.xlu0 %249
  %251 = vadd.xlane.f32.xlu0 %v226
  %v252 = vpop.xlane.xlu0 %251
  %253 = vadd.xlane.f32.xlu0 %v227
  %v254 = vpop.xlane.xlu0 %253
  %255 = vadd.xlane.f32.xlu0 %v228
  %v256 = vpop.xlane.xlu0 %255
  %257 = vadd.xlane.f32.xlu0 %v229
  %v258 = vpop.xlane.xlu0 %257
  %259 = vadd.xlane.f32.xlu0 %v230
  %v260 = vpop.xlane.xlu0 %259
  %261 = vadd.xlane.f32.xlu0 %v231
  %v262 = vpop.xlane.xlu0 %261
  %263 = vadd.xlane.f32.xlu0 %v232
  %v264 = vpop.xlane.xlu0 %263
  %v265 = vmul.f32 %v234, %v184
  %v266 = vmul.f32 %v236, %v184
  %v267 = vmul.f32 %v238, %v184
  %v268 = vmul.f32 %v240, %v184
  %v269 = vmul.f32 %v242, %v184
  %v270 = vmul.f32 %v244, %v184
  %v271 = vmul.f32 %v246, %v184
  %v272 = vmul.f32 %v248, %v184
  %v273 = vmul.f32 %v250, %v184
  %v274 = vmul.f32 %v252, %v184
  %v275 = vmul.f32 %v254, %v184
  %v276 = vmul.f32 %v256, %v184
  %v277 = vmul.f32 %v258, %v184
  %v278 = vmul.f32 %v260, %v184
  %v279 = vmul.f32 %v262, %v184
  %v280 = vmul.f32 %v264, %v184
  %v281 = vadd.f32 %v265, 1e-05
  %v282 = vadd.f32 %v266, 1e-05
  %v283 = vadd.f32 %v267, 1e-05
  %v284 = vadd.f32 %v268, 1e-05
  %v285 = vadd.f32 %v269, 1e-05
  %v286 = vadd.f32 %v270, 1e-05
  %v287 = vadd.f32 %v271, 1e-05
  %v288 = vadd.f32 %v272, 1e-05
  %v289 = vadd.f32 %v273, 1e-05
  %v290 = vadd.f32 %v274, 1e-05
  %v291 = vadd.f32 %v275, 1e-05
  %v292 = vadd.f32 %v276, 1e-05
  %v293 = vadd.f32 %v277, 1e-05
  %v294 = vadd.f32 %v278, 1e-05
  %v295 = vadd.f32 %v279, 1e-05
  %v296 = vadd.f32 %v280, 1e-05
  %v297 = vrsqrt.pop %v281
  %v298 = vrsqrt.pop %v282
  %v299 = vrsqrt.pop %v283
  %v300 = vrsqrt.pop %v284
  %v301 = vrsqrt.pop %v285
  %v302 = vrsqrt.pop %v286
  %v303 = vrsqrt.pop %v287
  %v304 = vrsqrt.pop %v288
  %v305 = vrsqrt.pop %v289
  %v306 = vrsqrt.pop %v290
  %v307 = vrsqrt.pop %v291
  %v308 = vrsqrt.pop %v292
  %v309 = vrsqrt.pop %v293
  %v310 = vrsqrt.pop %v294
  %v311 = vrsqrt.pop %v295
  %v312 = vrsqrt.pop %v296
  %v313 = vmul.f32 %v201, %v297
  %v314 = vmul.f32 %v202, %v298
  %v315 = vmul.f32 %v203, %v299
  %v316 = vmul.f32 %v204, %v300
  %v317 = vmul.f32 %v205, %v301
  %v318 = vmul.f32 %v206, %v302
  %v319 = vmul.f32 %v207, %v303
  %v320 = vmul.f32 %v208, %v304
  %v321 = vmul.f32 %v209, %v305
  %v322 = vmul.f32 %v210, %v306
  %v323 = vmul.f32 %v211, %v307
  %v324 = vmul.f32 %v212, %v308
  %v325 = vmul.f32 %v213, %v309
  %v326 = vmul.f32 %v214, %v310
  %v327 = vmul.f32 %v215, %v311
  %v328 = vmul.f32 %v216, %v312
  %v329 = vlaneseq
  %v330 = vshrl.u32 %v329, 7
  %v331 = vsub.s32 0, %v330
  %v332 = vrot.slane %v86, %v331
  %v333 = vmul.f32 %v313, %v332
  %v334 = vmul.f32 %v314, %v332
  %v335 = vmul.f32 %v315, %v332
  %v336 = vmul.f32 %v316, %v332
  %v337 = vmul.f32 %v317, %v332
  %v338 = vmul.f32 %v318, %v332
  %v339 = vmul.f32 %v319, %v332
  %v340 = vmul.f32 %v320, %v332
  %v341 = vmul.f32 %v321, %v332
  %v342 = vmul.f32 %v322, %v332
  %v343 = vmul.f32 %v323, %v332
  %v344 = vmul.f32 %v324, %v332
  %v345 = vmul.f32 %v325, %v332
  %v346 = vmul.f32 %v326, %v332
  %v347 = vmul.f32 %v327, %v332
  %v348 = vmul.f32 %v328, %v332
  %v349 = vlaneseq
  %v350 = vshrl.u32 %v349, 7
  %v351 = vsub.s32 1, %v350
  %v352 = vrot.slane %v86, %v351
  %v353 = vadd.f32 %v333, %v352
  %v354 = vadd.f32 %v334, %v352
  %v355 = vadd.f32 %v335, %v352
  %v356 = vadd.f32 %v336, %v352
  %v357 = vadd.f32 %v337, %v352
  %v358 = vadd.f32 %v338, %v352
  %v359 = vadd.f32 %v339, %v352
  %v360 = vadd.f32 %v340, %v352
  %v361 = vadd.f32 %v341, %v352
  %v362 = vadd.f32 %v342, %v352
  %v363 = vadd.f32 %v343, %v352
  %v364 = vadd.f32 %v344, %v352
  %v365 = vadd.f32 %v345, %v352
  %v366 = vadd.f32 %v346, %v352
  %v367 = vadd.f32 %v347, %v352
  %v368 = vadd.f32 %v348, %v352
  %v369 = vlaneseq
  %v370 = vshrl.u32 %v369, 7
  %v371 = vsub.s32 2, %v370
  %v372 = vrot.slane %v86, %v371
  %373 = vmatprep.subr.mxu0 0.0
  %374 = vmatpush1.msra.mxu0 %v88
  %375 = vmatprep.subr.mxu0 0.0
  %376 = vmatpush1.msra.mxu0 %v89
  %377 = vmatprep.subr.mxu0 0.0
  %378 = vmatpush1.msra.mxu0 %v90
  %379 = vmatprep.subr.mxu0 0.0
  %380 = vmatpush1.msra.mxu0 %v91
  %381 = vmatprep.subr.mxu0 0.0
  %382 = vmatpush1.msra.mxu0 %v92
  %383 = vmatprep.subr.mxu0 0.0
  %384 = vmatpush1.msra.mxu0 %v93
  %385 = vmatprep.subr.mxu0 0.0
  %386 = vmatpush1.msra.mxu0 %v94
  %387 = vmatprep.subr.mxu0 0.0
  %388 = vmatpush1.msra.mxu0 %v95
  %389 = vmatprep.subr.mxu0 0.0
  %390 = vmatpush1.msra.mxu0 %v96
  %391 = vmatprep.subr.mxu0 0.0
  %392 = vmatpush1.msra.mxu0 %v97
  %393 = vmatprep.subr.mxu0 0.0
  %394 = vmatpush1.msra.mxu0 %v98
  %395 = vmatprep.subr.mxu0 0.0
  %396 = vmatpush1.msra.mxu0 %v99
  %397 = vmatprep.subr.mxu0 0.0
  %398 = vmatpush1.msra.mxu0 %v100
  %399 = vmatprep.subr.mxu0 0.0
  %400 = vmatpush1.msra.mxu0 %v101
  %401 = vmatprep.subr.mxu0 0.0
  %402 = vmatpush1.msra.mxu0 %v102
  %403 = vmatprep.subr.mxu0 0.0
  %404 = vmatpush1.msra.mxu0 %v103
  %405 = vmatprep.subr.mxu0 0.0
  %406 = vmatpush1.msra.mxu0 0.0
  %407 = vmatprep.subr.mxu0 0.0
  %408 = vmatpush1.msra.mxu0 0.0
  %409 = vmatprep.subr.mxu0 0.0
  %410 = vmatpush1.msra.mxu0 0.0
  %411 = vmatprep.subr.mxu0 0.0
  %412 = vmatpush1.msra.mxu0 0.0
  %413 = vmatprep.subr.mxu0 0.0
  %414 = vmatpush1.msra.mxu0 0.0
  %415 = vmatprep.subr.mxu0 0.0
  %416 = vmatpush1.msra.mxu0 0.0
  %417 = vmatprep.subr.mxu0 0.0
  %418 = vmatpush1.msra.mxu0 0.0
  %419 = vmatprep.subr.mxu0 0.0
  %420 = vmatpush1.msra.mxu0 0.0
  %421 = vmatprep.subr.mxu0 0.0
  %422 = vmatpush1.msra.mxu0 0.0
  %423 = vmatprep.subr.mxu0 0.0
  %424 = vmatpush1.msra.mxu0 0.0
  %425 = vmatprep.subr.mxu0 0.0
  %426 = vmatpush1.msra.mxu0 0.0
  %427 = vmatprep.subr.mxu0 0.0
  %428 = vmatpush1.msra.mxu0 0.0
  %429 = vmatprep.subr.mxu0 0.0
  %430 = vmatpush1.msra.mxu0 0.0
  %431 = vmatprep.subr.mxu0 0.0
  %432 = vmatpush1.msra.mxu0 0.0
  %433 = vmatprep.subr.mxu0 0.0
  %434 = vmatpush1.msra.mxu0 0.0
  %435 = vmatprep.subr.mxu0 0.0
  %436 = vmatpush1.msra.mxu0 0.0
  %437 = vmatprep.mubr.f32.mxu0 0.0
  %438 = vmatmul.mubr.f32.gmra.mrb[0].mxu0 %v353
  %v439 = vpop.f32.mrb[0].mxu0
  %v440 = vadd.f32 %v372, %v439
  %v441 = vpop.f32.mrb[0].mxu0
  %442 = vmatprep.mubr.f32.mxu0 0.0
  %443 = vmatmul.mubr.f32.gmra.mrb[0].mxu0 %v354
  %v444 = vpop.f32.mrb[0].mxu0
  %v445 = vadd.f32 %v372, %v444
  %v446 = vpop.f32.mrb[0].mxu0
  %447 = vmatprep.mubr.f32.mxu0 0.0
  %448 = vmatmul.mubr.f32.gmra.mrb[0].mxu0 %v355
  %v449 = vpop.f32.mrb[0].mxu0
  %v450 = vadd.f32 %v372, %v449
  %v451 = vpop.f32.mrb[0].mxu0
  %452 = vmatprep.mubr.f32.mxu0 0.0
  %453 = vmatmul.mubr.f32.gmra.mrb[0].mxu0 %v356
  %v454 = vpop.f32.mrb[0].mxu0
  %v455 = vadd.f32 %v372, %v454
  %v456 = vpop.f32.mrb[0].mxu0
  %457 = vmatprep.mubr.f32.mxu0 0.0
  %458 = vmatmul.mubr.f32.gmra.mrb[0].mxu0 %v357
  %v459 = vpop.f32.mrb[0].mxu0
  %v460 = vadd.f32 %v372, %v459
  %v461 = vpop.f32.mrb[0].mxu0
  %462 = vmatprep.mubr.f32.mxu0 0.0
  %463 = vmatmul.mubr.f32.gmra.mrb[0].mxu0 %v358
  %v464 = vpop.f32.mrb[0].mxu0
  %v465 = vadd.f32 %v372, %v464
  %v466 = vpop.f32.mrb[0].mxu0
  %467 = vmatprep.mubr.f32.mxu0 0.0
  %468 = vmatmul.mubr.f32.gmra.mrb[0].mxu0 %v359
  %v469 = vpop.f32.mrb[0].mxu0
  %v470 = vadd.f32 %v372, %v469
  %v471 = vpop.f32.mrb[0].mxu0
  %472 = vmatprep.mubr.f32.mxu0 0.0
  %473 = vmatmul.mubr.f32.gmra.mrb[0].mxu0 %v360
  %v474 = vpop.f32.mrb[0].mxu0
  %v475 = vadd.f32 %v372, %v474
  %v476 = vpop.f32.mrb[0].mxu0
  %477 = vmatprep.mubr.f32.mxu0 0.0
  %478 = vmatmul.mubr.f32.gmra.mrb[0].mxu0 %v361
  %v479 = vpop.f32.mrb[0].mxu0
  %v480 = vadd.f32 %v372, %v479
  %v481 = vpop.f32.mrb[0].mxu0
  %482 = vmatprep.mubr.f32.mxu0 0.0
  %483 = vmatmul.mubr.f32.gmra.mrb[0].mxu0 %v362
  %v484 = vpop.f32.mrb[0].mxu0
  %v485 = vadd.f32 %v372, %v484
  %v486 = vpop.f32.mrb[0].mxu0
  %487 = vmatprep.mubr.f32.mxu0 0.0
  %488 = vmatmul.mubr.f32.gmra.mrb[0].mxu0 %v363
  %v489 = vpop.f32.mrb[0].mxu0
  %v490 = vadd.f32 %v372, %v489
  %v491 = vpop.f32.mrb[0].mxu0
  %492 = vmatprep.mubr.f32.mxu0 0.0
  %493 = vmatmul.mubr.f32.gmra.mrb[0].mxu0 %v364
  %v494 = vpop.f32.mrb[0].mxu0
  %v495 = vadd.f32 %v372, %v494
  %v496 = vpop.f32.mrb[0].mxu0
  %497 = vmatprep.mubr.f32.mxu0 0.0
  %498 = vmatmul.mubr.f32.gmra.mrb[0].mxu0 %v365
  %v499 = vpop.f32.mrb[0].mxu0
  %v500 = vadd.f32 %v372, %v499
  %v501 = vpop.f32.mrb[0].mxu0
  %502 = vmatprep.mubr.f32.mxu0 0.0
  %503 = vmatmul.mubr.f32.gmra.mrb[0].mxu0 %v366
  %v504 = vpop.f32.mrb[0].mxu0
  %v505 = vadd.f32 %v372, %v504
  %v506 = vpop.f32.mrb[0].mxu0
  %507 = vmatprep.mubr.f32.mxu0 0.0
  %508 = vmatmul.mubr.f32.gmra.mrb[0].mxu0 %v367
  %v509 = vpop.f32.mrb[0].mxu0
  %v510 = vadd.f32 %v372, %v509
  %v511 = vpop.f32.mrb[0].mxu0
  %512 = vmatprep.mubr.f32.mxu0 0.0
  %513 = vmatmul.mubr.f32.gmra.mrb[0].mxu0 %v368
  %v514 = vpop.f32.mrb[0].mxu0
  %v515 = vadd.f32 %v372, %v514
  %v516 = vpop.f32.mrb[0].mxu0
  %517 = vdwg.mxu0
  %v518 = vmul.f32 %v440, 0.5
  %v519 = vmul.f32 %v445, 0.5
  %v520 = vmul.f32 %v450, 0.5
  %v521 = vmul.f32 %v455, 0.5
  %v522 = vmul.f32 %v460, 0.5
  %v523 = vmul.f32 %v465, 0.5
  %v524 = vmul.f32 %v470, 0.5
  %v525 = vmul.f32 %v475, 0.5
  %v526 = vmul.f32 %v480, 0.5
  %v527 = vmul.f32 %v485, 0.5
  %v528 = vmul.f32 %v490, 0.5
  %v529 = vmul.f32 %v495, 0.5
  %v530 = vmul.f32 %v500, 0.5
  %v531 = vmul.f32 %v505, 0.5
  %v532 = vmul.f32 %v510, 0.5
  %v533 = vmul.f32 %v515, 0.5
  %v534 = vmul.f32 %v440, 0.70710677
  %v535 = vmul.f32 %v445, 0.70710677
  %v536 = vmul.f32 %v450, 0.70710677
  %v537 = vmul.f32 %v455, 0.70710677
  %v538 = vmul.f32 %v460, 0.70710677
  %v539 = vmul.f32 %v465, 0.70710677
  %v540 = vmul.f32 %v470, 0.70710677
  %v541 = vmul.f32 %v475, 0.70710677
  %v542 = vmul.f32 %v480, 0.70710677
  %v543 = vmul.f32 %v485, 0.70710677
  %v544 = vmul.f32 %v490, 0.70710677
  %v545 = vmul.f32 %v495, 0.70710677
  %v546 = vmul.f32 %v500, 0.70710677
  %v547 = vmul.f32 %v505, 0.70710677
  %v548 = vmul.f32 %v510, 0.70710677
  %v549 = vmul.f32 %v515, 0.70710677
  %v550 = verf.f32.pop %v534
  %v551 = verf.f32.pop %v535
  %v552 = verf.f32.pop %v536
  %v553 = verf.f32.pop %v537
  %v554 = verf.f32.pop %v538
  %v555 = verf.f32.pop %v539
  %v556 = verf.f32.pop %v540
  %v557 = verf.f32.pop %v541
  %v558 = verf.f32.pop %v542
  %v559 = verf.f32.pop %v543
  %v560 = verf.f32.pop %v544
  %v561 = verf.f32.pop %v545
  %v562 = verf.f32.pop %v546
  %v563 = verf.f32.pop %v547
  %v564 = verf.f32.pop %v548
  %v565 = verf.f32.pop %v549
  %v566 = vadd.f32 %v550, 1.0
  %v567 = vadd.f32 %v551, 1.0
  %v568 = vadd.f32 %v552, 1.0
  %v569 = vadd.f32 %v553, 1.0
  %v570 = vadd.f32 %v554, 1.0
  %v571 = vadd.f32 %v555, 1.0
  %v572 = vadd.f32 %v556, 1.0
  %v573 = vadd.f32 %v557, 1.0
  %v574 = vadd.f32 %v558, 1.0
  %v575 = vadd.f32 %v559, 1.0
  %v576 = vadd.f32 %v560, 1.0
  %v577 = vadd.f32 %v561, 1.0
  %v578 = vadd.f32 %v562, 1.0
  %v579 = vadd.f32 %v563, 1.0
  %v580 = vadd.f32 %v564, 1.0
  %v581 = vadd.f32 %v565, 1.0
  %v582 = vmul.f32 %v518, %v566
  %v583 = vmul.f32 %v519, %v567
  %v584 = vmul.f32 %v520, %v568
  %v585 = vmul.f32 %v521, %v569
  %v586 = vmul.f32 %v522, %v570
  %v587 = vmul.f32 %v523, %v571
  %v588 = vmul.f32 %v524, %v572
  %v589 = vmul.f32 %v525, %v573
  %v590 = vmul.f32 %v526, %v574
  %v591 = vmul.f32 %v527, %v575
  %v592 = vmul.f32 %v528, %v576
  %v593 = vmul.f32 %v529, %v577
  %v594 = vmul.f32 %v530, %v578
  %v595 = vmul.f32 %v531, %v579
  %v596 = vmul.f32 %v532, %v580
  %v597 = vmul.f32 %v533, %v581
  %598 = vadd.xlane.f32.xlu0 %v70
  %v599 = vpop.xlane.xlu0 %598
  %600 = vadd.xlane.f32.xlu0 %v71
  %v601 = vpop.xlane.xlu0 %600
  %602 = vadd.xlane.f32.xlu0 %v72
  %v603 = vpop.xlane.xlu0 %602
  %604 = vadd.xlane.f32.xlu0 %v73
  %v605 = vpop.xlane.xlu0 %604
  %606 = vadd.xlane.f32.xlu0 %v74
  %v607 = vpop.xlane.xlu0 %606
  %608 = vadd.xlane.f32.xlu0 %v75
  %v609 = vpop.xlane.xlu0 %608
  %610 = vadd.xlane.f32.xlu0 %v76
  %v611 = vpop.xlane.xlu0 %610
  %612 = vadd.xlane.f32.xlu0 %v77
  %v613 = vpop.xlane.xlu0 %612
  %614 = vadd.xlane.f32.xlu0 %v78
  %v615 = vpop.xlane.xlu0 %614
  %616 = vadd.xlane.f32.xlu0 %v79
  %v617 = vpop.xlane.xlu0 %616
  %618 = vadd.xlane.f32.xlu0 %v80
  %v619 = vpop.xlane.xlu0 %618
  %620 = vadd.xlane.f32.xlu0 %v81
  %v621 = vpop.xlane.xlu0 %620
  %622 = vadd.xlane.f32.xlu0 %v82
  %v623 = vpop.xlane.xlu0 %622
  %624 = vadd.xlane.f32.xlu0 %v83
  %v625 = vpop.xlane.xlu0 %624
  %626 = vadd.xlane.f32.xlu0 %v84
  %v627 = vpop.xlane.xlu0 %626
  %628 = vadd.xlane.f32.xlu0 %v85
  %v629 = vpop.xlane.xlu0 %628
  %v630 = vmul.f32 %v599, %v184
  %v631 = vmul.f32 %v601, %v184
  %v632 = vmul.f32 %v603, %v184
  %v633 = vmul.f32 %v605, %v184
  %v634 = vmul.f32 %v607, %v184
  %v635 = vmul.f32 %v609, %v184
  %v636 = vmul.f32 %v611, %v184
  %v637 = vmul.f32 %v613, %v184
  %v638 = vmul.f32 %v615, %v184
  %v639 = vmul.f32 %v617, %v184
  %v640 = vmul.f32 %v619, %v184
  %v641 = vmul.f32 %v621, %v184
  %v642 = vmul.f32 %v623, %v184
  %v643 = vmul.f32 %v625, %v184
  %v644 = vmul.f32 %v627, %v184
  %v645 = vmul.f32 %v629, %v184
  %v646 = vsub.f32 %v70, %v630
  %v647 = vsub.f32 %v71, %v631
  %v648 = vsub.f32 %v72, %v632
  %v649 = vsub.f32 %v73, %v633
  %v650 = vsub.f32 %v74, %v634
  %v651 = vsub.f32 %v75, %v635
  %v652 = vsub.f32 %v76, %v636
  %v653 = vsub.f32 %v77, %v637
  %v654 = vsub.f32 %v78, %v638
  %v655 = vsub.f32 %v79, %v639
  %v656 = vsub.f32 %v80, %v640
  %v657 = vsub.f32 %v81, %v641
  %v658 = vsub.f32 %v82, %v642
  %v659 = vsub.f32 %v83, %v643
  %v660 = vsub.f32 %v84, %v644
  %v661 = vsub.f32 %v85, %v645
  %v662 = vmul.f32 %v646, %v646
  %v663 = vmul.f32 %v647, %v647
  %v664 = vmul.f32 %v648, %v648
  %v665 = vmul.f32 %v649, %v649
  %v666 = vmul.f32 %v650, %v650
  %v667 = vmul.f32 %v651, %v651
  %v668 = vmul.f32 %v652, %v652
  %v669 = vmul.f32 %v653, %v653
  %v670 = vmul.f32 %v654, %v654
  %v671 = vmul.f32 %v655, %v655
  %v672 = vmul.f32 %v656, %v656
  %v673 = vmul.f32 %v657, %v657
  %v674 = vmul.f32 %v658, %v658
  %v675 = vmul.f32 %v659, %v659
  %v676 = vmul.f32 %v660, %v660
  %v677 = vmul.f32 %v661, %v661
  %678 = vadd.xlane.f32.xlu0 %v662
  %v679 = vpop.xlane.xlu0 %678
  %680 = vadd.xlane.f32.xlu0 %v663
  %v681 = vpop.xlane.xlu0 %680
  %682 = vadd.xlane.f32.xlu0 %v664
  %v683 = vpop.xlane.xlu0 %682
  %684 = vadd.xlane.f32.xlu0 %v665
  %v685 = vpop.xlane.xlu0 %684
  %686 = vadd.xlane.f32.xlu0 %v666
  %v687 = vpop.xlane.xlu0 %686
  %688 = vadd.xlane.f32.xlu0 %v667
  %v689 = vpop.xlane.xlu0 %688
  %690 = vadd.xlane.f32.xlu0 %v668
  %v691 = vpop.xlane.xlu0 %690
  %692 = vadd.xlane.f32.xlu0 %v669
  %v693 = vpop.xlane.xlu0 %692
  %694 = vadd.xlane.f32.xlu0 %v670
  %v695 = vpop.xlane.xlu0 %694
  %696 = vadd.xlane.f32.xlu0 %v671
  %v697 = vpop.xlane.xlu0 %696
  %698 = vadd.xlane.f32.xlu0 %v672
  %v699 = vpop.xlane.xlu0 %698
  %700 = vadd.xlane.f32.xlu0 %v673
  %v701 = vpop.xlane.xlu0 %700
  %702 = vadd.xlane.f32.xlu0 %v674
  %v703 = vpop.xlane.xlu0 %702
  %704 = vadd.xlane.f32.xlu0 %v675
  %v705 = vpop.xlane.xlu0 %704
  %706 = vadd.xlane.f32.xlu0 %v676
  %v707 = vpop.xlane.xlu0 %706
  %708 = vadd.xlane.f32.xlu0 %v677
  %v709 = vpop.xlane.xlu0 %708
  %v710 = vmul.f32 %v679, %v184
  %v711 = vmul.f32 %v681, %v184
  %v712 = vmul.f32 %v683, %v184
  %v713 = vmul.f32 %v685, %v184
  %v714 = vmul.f32 %v687, %v184
  %v715 = vmul.f32 %v689, %v184
  %v716 = vmul.f32 %v691, %v184
  %v717 = vmul.f32 %v693, %v184
  %v718 = vmul.f32 %v695, %v184
  %v719 = vmul.f32 %v697, %v184
  %v720 = vmul.f32 %v699, %v184
  %v721 = vmul.f32 %v701, %v184
  %v722 = vmul.f32 %v703, %v184
  %v723 = vmul.f32 %v705, %v184
  %v724 = vmul.f32 %v707, %v184
  %v725 = vmul.f32 %v709, %v184
  %v726 = vadd.f32 %v710, 1e-05
  %v727 = vadd.f32 %v711, 1e-05
  %v728 = vadd.f32 %v712, 1e-05
  %v729 = vadd.f32 %v713, 1e-05
  %v730 = vadd.f32 %v714, 1e-05
  %v731 = vadd.f32 %v715, 1e-05
  %v732 = vadd.f32 %v716, 1e-05
  %v733 = vadd.f32 %v717, 1e-05
  %v734 = vadd.f32 %v718, 1e-05
  %v735 = vadd.f32 %v719, 1e-05
  %v736 = vadd.f32 %v720, 1e-05
  %v737 = vadd.f32 %v721, 1e-05
  %v738 = vadd.f32 %v722, 1e-05
  %v739 = vadd.f32 %v723, 1e-05
  %v740 = vadd.f32 %v724, 1e-05
  %v741 = vadd.f32 %v725, 1e-05
  %v742 = vrsqrt.pop %v726
  %v743 = vrsqrt.pop %v727
  %v744 = vrsqrt.pop %v728
  %v745 = vrsqrt.pop %v729
  %v746 = vrsqrt.pop %v730
  %v747 = vrsqrt.pop %v731
  %v748 = vrsqrt.pop %v732
  %v749 = vrsqrt.pop %v733
  %v750 = vrsqrt.pop %v734
  %v751 = vrsqrt.pop %v735
  %v752 = vrsqrt.pop %v736
  %v753 = vrsqrt.pop %v737
  %v754 = vrsqrt.pop %v738
  %v755 = vrsqrt.pop %v739
  %v756 = vrsqrt.pop %v740
  %v757 = vrsqrt.pop %v741
  %v758 = vmul.f32 %v646, %v742
  %v759 = vmul.f32 %v647, %v743
  %v760 = vmul.f32 %v648, %v744
  %v761 = vmul.f32 %v649, %v745
  %v762 = vmul.f32 %v650, %v746
  %v763 = vmul.f32 %v651, %v747
  %v764 = vmul.f32 %v652, %v748
  %v765 = vmul.f32 %v653, %v749
  %v766 = vmul.f32 %v654, %v750
  %v767 = vmul.f32 %v655, %v751
  %v768 = vmul.f32 %v656, %v752
  %v769 = vmul.f32 %v657, %v753
  %v770 = vmul.f32 %v658, %v754
  %v771 = vmul.f32 %v659, %v755
  %v772 = vmul.f32 %v660, %v756
  %v773 = vmul.f32 %v661, %v757
  %v774 = vlaneseq
  %v775 = vshrl.u32 %v774, 7
  %v776 = vsub.s32 3, %v775
  %v777 = vrot.slane %v86, %v776
  %v778 = vmul.f32 %v758, %v777
  %v779 = vmul.f32 %v759, %v777
  %v780 = vmul.f32 %v760, %v777
  %v781 = vmul.f32 %v761, %v777
  %v782 = vmul.f32 %v762, %v777
  %v783 = vmul.f32 %v763, %v777
  %v784 = vmul.f32 %v764, %v777
  %v785 = vmul.f32 %v765, %v777
  %v786 = vmul.f32 %v766, %v777
  %v787 = vmul.f32 %v767, %v777
  %v788 = vmul.f32 %v768, %v777
  %v789 = vmul.f32 %v769, %v777
  %v790 = vmul.f32 %v770, %v777
  %v791 = vmul.f32 %v771, %v777
  %v792 = vmul.f32 %v772, %v777
  %v793 = vmul.f32 %v773, %v777
  %v794 = vlaneseq
  %v795 = vshrl.u32 %v794, 7
  %v796 = vsub.s32 4, %v795
  %v797 = vrot.slane %v86, %v796
  %v798 = vadd.f32 %v778, %v797
  %v799 = vadd.f32 %v779, %v797
  %v800 = vadd.f32 %v780, %v797
  %v801 = vadd.f32 %v781, %v797
  %v802 = vadd.f32 %v782, %v797
  %v803 = vadd.f32 %v783, %v797
  %v804 = vadd.f32 %v784, %v797
  %v805 = vadd.f32 %v785, %v797
  %v806 = vadd.f32 %v786, %v797
  %v807 = vadd.f32 %v787, %v797
  %v808 = vadd.f32 %v788, %v797
  %v809 = vadd.f32 %v789, %v797
  %v810 = vadd.f32 %v790, %v797
  %v811 = vadd.f32 %v791, %v797
  %v812 = vadd.f32 %v792, %v797
  %v813 = vadd.f32 %v793, %v797
  %v814 = vlaneseq
  %v815 = vshrl.u32 %v814, 7
  %v816 = vsub.s32 5, %v815
  %v817 = vrot.slane %v86, %v816
  %818 = vmatprep.subr.mxu0 0.0
  %819 = vmatpush1.msra.mxu0 %v104
  %820 = vmatprep.subr.mxu0 0.0
  %821 = vmatpush1.msra.mxu0 %v105
  %822 = vmatprep.subr.mxu0 0.0
  %823 = vmatpush1.msra.mxu0 %v106
  %824 = vmatprep.subr.mxu0 0.0
  %825 = vmatpush1.msra.mxu0 %v107
  %826 = vmatprep.subr.mxu0 0.0
  %827 = vmatpush1.msra.mxu0 %v108
  %828 = vmatprep.subr.mxu0 0.0
  %829 = vmatpush1.msra.mxu0 %v109
  %830 = vmatprep.subr.mxu0 0.0
  %831 = vmatpush1.msra.mxu0 %v110
  %832 = vmatprep.subr.mxu0 0.0
  %833 = vmatpush1.msra.mxu0 %v111
  %834 = vmatprep.subr.mxu0 0.0
  %835 = vmatpush1.msra.mxu0 %v112
  %836 = vmatprep.subr.mxu0 0.0
  %837 = vmatpush1.msra.mxu0 %v113
  %838 = vmatprep.subr.mxu0 0.0
  %839 = vmatpush1.msra.mxu0 %v114
  %840 = vmatprep.subr.mxu0 0.0
  %841 = vmatpush1.msra.mxu0 %v115
  %842 = vmatprep.subr.mxu0 0.0
  %843 = vmatpush1.msra.mxu0 %v116
  %844 = vmatprep.subr.mxu0 0.0
  %845 = vmatpush1.msra.mxu0 %v117
  %846 = vmatprep.subr.mxu0 0.0
  %847 = vmatpush1.msra.mxu0 %v118
  %848 = vmatprep.subr.mxu0 0.0
  %849 = vmatpush1.msra.mxu0 %v119
  %850 = vmatprep.subr.mxu0 0.0
  %851 = vmatpush1.msra.mxu0 0.0
  %852 = vmatprep.subr.mxu0 0.0
  %853 = vmatpush1.msra.mxu0 0.0
  %854 = vmatprep.subr.mxu0 0.0
  %855 = vmatpush1.msra.mxu0 0.0
  %856 = vmatprep.subr.mxu0 0.0
  %857 = vmatpush1.msra.mxu0 0.0
  %858 = vmatprep.subr.mxu0 0.0
  %859 = vmatpush1.msra.mxu0 0.0
  %860 = vmatprep.subr.mxu0 0.0
  %861 = vmatpush1.msra.mxu0 0.0
  %862 = vmatprep.subr.mxu0 0.0
  %863 = vmatpush1.msra.mxu0 0.0
  %864 = vmatprep.subr.mxu0 0.0
  %865 = vmatpush1.msra.mxu0 0.0
  %866 = vmatprep.subr.mxu0 0.0
  %867 = vmatpush1.msra.mxu0 0.0
  %868 = vmatprep.subr.mxu0 0.0
  %869 = vmatpush1.msra.mxu0 0.0
  %870 = vmatprep.subr.mxu0 0.0
  %871 = vmatpush1.msra.mxu0 0.0
  %872 = vmatprep.subr.mxu0 0.0
  %873 = vmatpush1.msra.mxu0 0.0
  %874 = vmatprep.subr.mxu0 0.0
  %875 = vmatpush1.msra.mxu0 0.0
  %876 = vmatprep.subr.mxu0 0.0
  %877 = vmatpush1.msra.mxu0 0.0
  %878 = vmatprep.subr.mxu0 0.0
  %879 = vmatpush1.msra.mxu0 0.0
  %880 = vmatprep.subr.mxu0 0.0
  %881 = vmatpush1.msra.mxu0 0.0
  %882 = vmatprep.mubr.f32.mxu0 0.0
  %883 = vmatmul.mubr.f32.gmra.mrb[0].mxu0 %v798
  %v884 = vpop.f32.mrb[0].mxu0
  %v885 = vadd.f32 %v817, %v884
  %v886 = vpop.f32.mrb[0].mxu0
  %887 = vmatprep.mubr.f32.mxu0 0.0
  %888 = vmatmul.mubr.f32.gmra.mrb[0].mxu0 %v799
  %v889 = vpop.f32.mrb[0].mxu0
  %v890 = vadd.f32 %v817, %v889
  %v891 = vpop.f32.mrb[0].mxu0
  %892 = vmatprep.mubr.f32.mxu0 0.0
  %893 = vmatmul.mubr.f32.gmra.mrb[0].mxu0 %v800
  %v894 = vpop.f32.mrb[0].mxu0
  %v895 = vadd.f32 %v817, %v894
  %v896 = vpop.f32.mrb[0].mxu0
  %897 = vmatprep.mubr.f32.mxu0 0.0
  %898 = vmatmul.mubr.f32.gmra.mrb[0].mxu0 %v801
  %v899 = vpop.f32.mrb[0].mxu0
  %v900 = vadd.f32 %v817, %v899
  %v901 = vpop.f32.mrb[0].mxu0
  %902 = vmatprep.mubr.f32.mxu0 0.0
  %903 = vmatmul.mubr.f32.gmra.mrb[0].mxu0 %v802
  %v904 = vpop.f32.mrb[0].mxu0
  %v905 = vadd.f32 %v817, %v904
  %v906 = vpop.f32.mrb[0].mxu0
  %907 = vmatprep.mubr.f32.mxu0 0.0
  %908 = vmatmul.mubr.f32.gmra.mrb[0].mxu0 %v803
  %v909 = vpop.f32.mrb[0].mxu0
  %v910 = vadd.f32 %v817, %v909
  %v911 = vpop.f32.mrb[0].mxu0
  %912 = vmatprep.mubr.f32.mxu0 0.0
  %913 = vmatmul.mubr.f32.gmra.mrb[0].mxu0 %v804
  %v914 = vpop.f32.mrb[0].mxu0
  %v915 = vadd.f32 %v817, %v914
  %v916 = vpop.f32.mrb[0].mxu0
  %917 = vmatprep.mubr.f32.mxu0 0.0
  %918 = vmatmul.mubr.f32.gmra.mrb[0].mxu0 %v805
  %v919 = vpop.f32.mrb[0].mxu0
  %v920 = vadd.f32 %v817, %v919
  %v921 = vpop.f32.mrb[0].mxu0
  %922 = vmatprep.mubr.f32.mxu0 0.0
  %923 = vmatmul.mubr.f32.gmra.mrb[0].mxu0 %v806
  %v924 = vpop.f32.mrb[0].mxu0
  %v925 = vadd.f32 %v817, %v924
  %v926 = vpop.f32.mrb[0].mxu0
  %927 = vmatprep.mubr.f32.mxu0 0.0
  %928 = vmatmul.mubr.f32.gmra.mrb[0].mxu0 %v807
  %v929 = vpop.f32.mrb[0].mxu0
  %v930 = vadd.f32 %v817, %v929
  %v931 = vpop.f32.mrb[0].mxu0
  %932 = vmatprep.mubr.f32.mxu0 0.0
  %933 = vmatmul.mubr.f32.gmra.mrb[0].mxu0 %v808
  %v934 = vpop.f32.mrb[0].mxu0
  %v935 = vadd.f32 %v817, %v934
  %v936 = vpop.f32.mrb[0].mxu0
  %937 = vmatprep.mubr.f32.mxu0 0.0
  %938 = vmatmul.mubr.f32.gmra.mrb[0].mxu0 %v809
  %v939 = vpop.f32.mrb[0].mxu0
  %v940 = vadd.f32 %v817, %v939
  %v941 = vpop.f32.mrb[0].mxu0
  %942 = vmatprep.mubr.f32.mxu0 0.0
  %943 = vmatmul.mubr.f32.gmra.mrb[0].mxu0 %v810
  %v944 = vpop.f32.mrb[0].mxu0
  %v945 = vadd.f32 %v817, %v944
  %v946 = vpop.f32.mrb[0].mxu0
  %947 = vmatprep.mubr.f32.mxu0 0.0
  %948 = vmatmul.mubr.f32.gmra.mrb[0].mxu0 %v811
  %v949 = vpop.f32.mrb[0].mxu0
  %v950 = vadd.f32 %v817, %v949
  %v951 = vpop.f32.mrb[0].mxu0
  %952 = vmatprep.mubr.f32.mxu0 0.0
  %953 = vmatmul.mubr.f32.gmra.mrb[0].mxu0 %v812
  %v954 = vpop.f32.mrb[0].mxu0
  %v955 = vadd.f32 %v817, %v954
  %v956 = vpop.f32.mrb[0].mxu0
  %957 = vmatprep.mubr.f32.mxu0 0.0
  %958 = vmatmul.mubr.f32.gmra.mrb[0].mxu0 %v813
  %v959 = vpop.f32.mrb[0].mxu0
  %v960 = vadd.f32 %v817, %v959
  %v961 = vpop.f32.mrb[0].mxu0
  %962 = vdwg.mxu0
  %v963 = vmul.f32 %v885, 0.5
  %v964 = vmul.f32 %v890, 0.5
  %v965 = vmul.f32 %v895, 0.5
  %v966 = vmul.f32 %v900, 0.5
  %v967 = vmul.f32 %v905, 0.5
  %v968 = vmul.f32 %v910, 0.5
  %v969 = vmul.f32 %v915, 0.5
  %v970 = vmul.f32 %v920, 0.5
  %v971 = vmul.f32 %v925, 0.5
  %v972 = vmul.f32 %v930, 0.5
  %v973 = vmul.f32 %v935, 0.5
  %v974 = vmul.f32 %v940, 0.5
  %v975 = vmul.f32 %v945, 0.5
  %v976 = vmul.f32 %v950, 0.5
  %v977 = vmul.f32 %v955, 0.5
  %v978 = vmul.f32 %v960, 0.5
  %v979 = vmul.f32 %v885, 0.70710677
  %v980 = vmul.f32 %v890, 0.70710677
  %v981 = vmul.f32 %v895, 0.70710677
  %v982 = vmul.f32 %v900, 0.70710677
  %v983 = vmul.f32 %v905, 0.70710677
  %v984 = vmul.f32 %v910, 0.70710677
  %v985 = vmul.f32 %v915, 0.70710677
  %v986 = vmul.f32 %v920, 0.70710677
  %v987 = vmul.f32 %v925, 0.70710677
  %v988 = vmul.f32 %v930, 0.70710677
  %v989 = vmul.f32 %v935, 0.70710677
  %v990 = vmul.f32 %v940, 0.70710677
  %v991 = vmul.f32 %v945, 0.70710677
  %v992 = vmul.f32 %v950, 0.70710677
  %v993 = vmul.f32 %v955, 0.70710677
  %v994 = vmul.f32 %v960, 0.70710677
  %v995 = verf.f32.pop %v979
  %v996 = verf.f32.pop %v980
  %v997 = verf.f32.pop %v981
  %v998 = verf.f32.pop %v982
  %v999 = verf.f32.pop %v983
  %v1000 = verf.f32.pop %v984
  %v1001 = verf.f32.pop %v985
  %v1002 = verf.f32.pop %v986
  %v1003 = verf.f32.pop %v987
  %v1004 = verf.f32.pop %v988
  %v1005 = verf.f32.pop %v989
  %v1006 = verf.f32.pop %v990
  %v1007 = verf.f32.pop %v991
  %v1008 = verf.f32.pop %v992
  %v1009 = verf.f32.pop %v993
  %v1010 = verf.f32.pop %v994
  %v1011 = vadd.f32 %v995, 1.0
  %v1012 = vadd.f32 %v996, 1.0
  %v1013 = vadd.f32 %v997, 1.0
  %v1014 = vadd.f32 %v998, 1.0
  %v1015 = vadd.f32 %v999, 1.0
  %v1016 = vadd.f32 %v1000, 1.0
  %v1017 = vadd.f32 %v1001, 1.0
  %v1018 = vadd.f32 %v1002, 1.0
  %v1019 = vadd.f32 %v1003, 1.0
  %v1020 = vadd.f32 %v1004, 1.0
  %v1021 = vadd.f32 %v1005, 1.0
  %v1022 = vadd.f32 %v1006, 1.0
  %v1023 = vadd.f32 %v1007, 1.0
  %v1024 = vadd.f32 %v1008, 1.0
  %v1025 = vadd.f32 %v1009, 1.0
  %v1026 = vadd.f32 %v1010, 1.0
  %v1027 = vmul.f32 %v963, %v1011
  %v1028 = vmul.f32 %v964, %v1012
  %v1029 = vmul.f32 %v965, %v1013
  %v1030 = vmul.f32 %v966, %v1014
  %v1031 = vmul.f32 %v967, %v1015
  %v1032 = vmul.f32 %v968, %v1016
  %v1033 = vmul.f32 %v969, %v1017
  %v1034 = vmul.f32 %v970, %v1018
  %v1035 = vmul.f32 %v971, %v1019
  %v1036 = vmul.f32 %v972, %v1020
  %v1037 = vmul.f32 %v973, %v1021
  %v1038 = vmul.f32 %v974, %v1022
  %v1039 = vmul.f32 %v975, %v1023
  %v1040 = vmul.f32 %v976, %v1024
  %v1041 = vmul.f32 %v977, %v1025
  %v1042 = vmul.f32 %v978, %v1026
  %1043 = vadd.xlane.f32.xlu0 %v582
  %v1044 = vpop.xlane.xlu0 %1043
  %1045 = vadd.xlane.f32.xlu0 %v583
  %v1046 = vpop.xlane.xlu0 %1045
  %1047 = vadd.xlane.f32.xlu0 %v584
  %v1048 = vpop.xlane.xlu0 %1047
  %1049 = vadd.xlane.f32.xlu0 %v585
  %v1050 = vpop.xlane.xlu0 %1049
  %1051 = vadd.xlane.f32.xlu0 %v586
  %v1052 = vpop.xlane.xlu0 %1051
  %1053 = vadd.xlane.f32.xlu0 %v587
  %v1054 = vpop.xlane.xlu0 %1053
  %1055 = vadd.xlane.f32.xlu0 %v588
  %v1056 = vpop.xlane.xlu0 %1055
  %1057 = vadd.xlane.f32.xlu0 %v589
  %v1058 = vpop.xlane.xlu0 %1057
  %1059 = vadd.xlane.f32.xlu0 %v590
  %v1060 = vpop.xlane.xlu0 %1059
  %1061 = vadd.xlane.f32.xlu0 %v591
  %v1062 = vpop.xlane.xlu0 %1061
  %1063 = vadd.xlane.f32.xlu0 %v592
  %v1064 = vpop.xlane.xlu0 %1063
  %1065 = vadd.xlane.f32.xlu0 %v593
  %v1066 = vpop.xlane.xlu0 %1065
  %1067 = vadd.xlane.f32.xlu0 %v594
  %v1068 = vpop.xlane.xlu0 %1067
  %1069 = vadd.xlane.f32.xlu0 %v595
  %v1070 = vpop.xlane.xlu0 %1069
  %1071 = vadd.xlane.f32.xlu0 %v596
  %v1072 = vpop.xlane.xlu0 %1071
  %1073 = vadd.xlane.f32.xlu0 %v597
  %v1074 = vpop.xlane.xlu0 %1073
  %1075 = vadd.xlane.f32.xlu0 %v1027
  %v1076 = vpop.xlane.xlu0 %1075
  %1077 = vadd.xlane.f32.xlu0 %v1028
  %v1078 = vpop.xlane.xlu0 %1077
  %1079 = vadd.xlane.f32.xlu0 %v1029
  %v1080 = vpop.xlane.xlu0 %1079
  %1081 = vadd.xlane.f32.xlu0 %v1030
  %v1082 = vpop.xlane.xlu0 %1081
  %1083 = vadd.xlane.f32.xlu0 %v1031
  %v1084 = vpop.xlane.xlu0 %1083
  %1085 = vadd.xlane.f32.xlu0 %v1032
  %v1086 = vpop.xlane.xlu0 %1085
  %1087 = vadd.xlane.f32.xlu0 %v1033
  %v1088 = vpop.xlane.xlu0 %1087
  %1089 = vadd.xlane.f32.xlu0 %v1034
  %v1090 = vpop.xlane.xlu0 %1089
  %1091 = vadd.xlane.f32.xlu0 %v1035
  %v1092 = vpop.xlane.xlu0 %1091
  %1093 = vadd.xlane.f32.xlu0 %v1036
  %v1094 = vpop.xlane.xlu0 %1093
  %1095 = vadd.xlane.f32.xlu0 %v1037
  %v1096 = vpop.xlane.xlu0 %1095
  %1097 = vadd.xlane.f32.xlu0 %v1038
  %v1098 = vpop.xlane.xlu0 %1097
  %1099 = vadd.xlane.f32.xlu0 %v1039
  %v1100 = vpop.xlane.xlu0 %1099
  %1101 = vadd.xlane.f32.xlu0 %v1040
  %v1102 = vpop.xlane.xlu0 %1101
  %1103 = vadd.xlane.f32.xlu0 %v1041
  %v1104 = vpop.xlane.xlu0 %1103
  %1105 = vadd.xlane.f32.xlu0 %v1042
  %v1106 = vpop.xlane.xlu0 %1105
  %v1107 = vadd.f32 %v1044, %v1076
  %v1108 = vadd.f32 %v1046, %v1078
  %v1109 = vadd.f32 %v1048, %v1080
  %v1110 = vadd.f32 %v1050, %v1082
  %v1111 = vadd.f32 %v1052, %v1084
  %v1112 = vadd.f32 %v1054, %v1086
  %v1113 = vadd.f32 %v1056, %v1088
  %v1114 = vadd.f32 %v1058, %v1090
  %v1115 = vadd.f32 %v1060, %v1092
  %v1116 = vadd.f32 %v1062, %v1094
  %v1117 = vadd.f32 %v1064, %v1096
  %v1118 = vadd.f32 %v1066, %v1098
  %v1119 = vadd.f32 %v1068, %v1100
  %v1120 = vadd.f32 %v1070, %v1102
  %v1121 = vadd.f32 %v1072, %v1104
  %v1122 = vadd.f32 %v1074, %v1106
  %v1123 = vrcp.pop 256.0
  %v1124 = vmul.f32 %v1107, %v1123
  %v1125 = vmul.f32 %v1108, %v1123
  %v1126 = vmul.f32 %v1109, %v1123
  %v1127 = vmul.f32 %v1110, %v1123
  %v1128 = vmul.f32 %v1111, %v1123
  %v1129 = vmul.f32 %v1112, %v1123
  %v1130 = vmul.f32 %v1113, %v1123
  %v1131 = vmul.f32 %v1114, %v1123
  %v1132 = vmul.f32 %v1115, %v1123
  %v1133 = vmul.f32 %v1116, %v1123
  %v1134 = vmul.f32 %v1117, %v1123
  %v1135 = vmul.f32 %v1118, %v1123
  %v1136 = vmul.f32 %v1119, %v1123
  %v1137 = vmul.f32 %v1120, %v1123
  %v1138 = vmul.f32 %v1121, %v1123
  %v1139 = vmul.f32 %v1122, %v1123
  %v1140 = vsub.f32 %v582, %v1124
  %v1141 = vsub.f32 %v583, %v1125
  %v1142 = vsub.f32 %v584, %v1126
  %v1143 = vsub.f32 %v585, %v1127
  %v1144 = vsub.f32 %v586, %v1128
  %v1145 = vsub.f32 %v587, %v1129
  %v1146 = vsub.f32 %v588, %v1130
  %v1147 = vsub.f32 %v589, %v1131
  %v1148 = vsub.f32 %v590, %v1132
  %v1149 = vsub.f32 %v591, %v1133
  %v1150 = vsub.f32 %v592, %v1134
  %v1151 = vsub.f32 %v593, %v1135
  %v1152 = vsub.f32 %v594, %v1136
  %v1153 = vsub.f32 %v595, %v1137
  %v1154 = vsub.f32 %v596, %v1138
  %v1155 = vsub.f32 %v597, %v1139
  %v1156 = vsub.f32 %v1027, %v1124
  %v1157 = vsub.f32 %v1028, %v1125
  %v1158 = vsub.f32 %v1029, %v1126
  %v1159 = vsub.f32 %v1030, %v1127
  %v1160 = vsub.f32 %v1031, %v1128
  %v1161 = vsub.f32 %v1032, %v1129
  %v1162 = vsub.f32 %v1033, %v1130
  %v1163 = vsub.f32 %v1034, %v1131
  %v1164 = vsub.f32 %v1035, %v1132
  %v1165 = vsub.f32 %v1036, %v1133
  %v1166 = vsub.f32 %v1037, %v1134
  %v1167 = vsub.f32 %v1038, %v1135
  %v1168 = vsub.f32 %v1039, %v1136
  %v1169 = vsub.f32 %v1040, %v1137
  %v1170 = vsub.f32 %v1041, %v1138
  %v1171 = vsub.f32 %v1042, %v1139
  %v1172 = vmul.f32 %v1140, %v1140
  %v1173 = vmul.f32 %v1141, %v1141
  %v1174 = vmul.f32 %v1142, %v1142
  %v1175 = vmul.f32 %v1143, %v1143
  %v1176 = vmul.f32 %v1144, %v1144
  %v1177 = vmul.f32 %v1145, %v1145
  %v1178 = vmul.f32 %v1146, %v1146
  %v1179 = vmul.f32 %v1147, %v1147
  %v1180 = vmul.f32 %v1148, %v1148
  %v1181 = vmul.f32 %v1149, %v1149
  %v1182 = vmul.f32 %v1150, %v1150
  %v1183 = vmul.f32 %v1151, %v1151
  %v1184 = vmul.f32 %v1152, %v1152
  %v1185 = vmul.f32 %v1153, %v1153
  %v1186 = vmul.f32 %v1154, %v1154
  %v1187 = vmul.f32 %v1155, %v1155
  %1188 = vadd.xlane.f32.xlu0 %v1172
  %v1189 = vpop.xlane.xlu0 %1188
  %1190 = vadd.xlane.f32.xlu0 %v1173
  %v1191 = vpop.xlane.xlu0 %1190
  %1192 = vadd.xlane.f32.xlu0 %v1174
  %v1193 = vpop.xlane.xlu0 %1192
  %1194 = vadd.xlane.f32.xlu0 %v1175
  %v1195 = vpop.xlane.xlu0 %1194
  %1196 = vadd.xlane.f32.xlu0 %v1176
  %v1197 = vpop.xlane.xlu0 %1196
  %1198 = vadd.xlane.f32.xlu0 %v1177
  %v1199 = vpop.xlane.xlu0 %1198
  %1200 = vadd.xlane.f32.xlu0 %v1178
  %v1201 = vpop.xlane.xlu0 %1200
  %1202 = vadd.xlane.f32.xlu0 %v1179
  %v1203 = vpop.xlane.xlu0 %1202
  %1204 = vadd.xlane.f32.xlu0 %v1180
  %v1205 = vpop.xlane.xlu0 %1204
  %1206 = vadd.xlane.f32.xlu0 %v1181
  %v1207 = vpop.xlane.xlu0 %1206
  %1208 = vadd.xlane.f32.xlu0 %v1182
  %v1209 = vpop.xlane.xlu0 %1208
  %1210 = vadd.xlane.f32.xlu0 %v1183
  %v1211 = vpop.xlane.xlu0 %1210
  %1212 = vadd.xlane.f32.xlu0 %v1184
  %v1213 = vpop.xlane.xlu0 %1212
  %1214 = vadd.xlane.f32.xlu0 %v1185
  %v1215 = vpop.xlane.xlu0 %1214
  %1216 = vadd.xlane.f32.xlu0 %v1186
  %v1217 = vpop.xlane.xlu0 %1216
  %1218 = vadd.xlane.f32.xlu0 %v1187
  %v1219 = vpop.xlane.xlu0 %1218
  %v1220 = vmul.f32 %v1156, %v1156
  %v1221 = vmul.f32 %v1157, %v1157
  %v1222 = vmul.f32 %v1158, %v1158
  %v1223 = vmul.f32 %v1159, %v1159
  %v1224 = vmul.f32 %v1160, %v1160
  %v1225 = vmul.f32 %v1161, %v1161
  %v1226 = vmul.f32 %v1162, %v1162
  %v1227 = vmul.f32 %v1163, %v1163
  %v1228 = vmul.f32 %v1164, %v1164
  %v1229 = vmul.f32 %v1165, %v1165
  %v1230 = vmul.f32 %v1166, %v1166
  %v1231 = vmul.f32 %v1167, %v1167
  %v1232 = vmul.f32 %v1168, %v1168
  %v1233 = vmul.f32 %v1169, %v1169
  %v1234 = vmul.f32 %v1170, %v1170
  %v1235 = vmul.f32 %v1171, %v1171
  %1236 = vadd.xlane.f32.xlu0 %v1220
  %v1237 = vpop.xlane.xlu0 %1236
  %1238 = vadd.xlane.f32.xlu0 %v1221
  %v1239 = vpop.xlane.xlu0 %1238
  %1240 = vadd.xlane.f32.xlu0 %v1222
  %v1241 = vpop.xlane.xlu0 %1240
  %1242 = vadd.xlane.f32.xlu0 %v1223
  %v1243 = vpop.xlane.xlu0 %1242
  %1244 = vadd.xlane.f32.xlu0 %v1224
  %v1245 = vpop.xlane.xlu0 %1244
  %1246 = vadd.xlane.f32.xlu0 %v1225
  %v1247 = vpop.xlane.xlu0 %1246
  %1248 = vadd.xlane.f32.xlu0 %v1226
  %v1249 = vpop.xlane.xlu0 %1248
  %1250 = vadd.xlane.f32.xlu0 %v1227
  %v1251 = vpop.xlane.xlu0 %1250
  %1252 = vadd.xlane.f32.xlu0 %v1228
  %v1253 = vpop.xlane.xlu0 %1252
  %1254 = vadd.xlane.f32.xlu0 %v1229
  %v1255 = vpop.xlane.xlu0 %1254
  %1256 = vadd.xlane.f32.xlu0 %v1230
  %v1257 = vpop.xlane.xlu0 %1256
  %1258 = vadd.xlane.f32.xlu0 %v1231
  %v1259 = vpop.xlane.xlu0 %1258
  %1260 = vadd.xlane.f32.xlu0 %v1232
  %v1261 = vpop.xlane.xlu0 %1260
  %1262 = vadd.xlane.f32.xlu0 %v1233
  %v1263 = vpop.xlane.xlu0 %1262
  %1264 = vadd.xlane.f32.xlu0 %v1234
  %v1265 = vpop.xlane.xlu0 %1264
  %1266 = vadd.xlane.f32.xlu0 %v1235
  %v1267 = vpop.xlane.xlu0 %1266
  %v1268 = vadd.f32 %v1189, %v1237
  %v1269 = vadd.f32 %v1191, %v1239
  %v1270 = vadd.f32 %v1193, %v1241
  %v1271 = vadd.f32 %v1195, %v1243
  %v1272 = vadd.f32 %v1197, %v1245
  %v1273 = vadd.f32 %v1199, %v1247
  %v1274 = vadd.f32 %v1201, %v1249
  %v1275 = vadd.f32 %v1203, %v1251
  %v1276 = vadd.f32 %v1205, %v1253
  %v1277 = vadd.f32 %v1207, %v1255
  %v1278 = vadd.f32 %v1209, %v1257
  %v1279 = vadd.f32 %v1211, %v1259
  %v1280 = vadd.f32 %v1213, %v1261
  %v1281 = vadd.f32 %v1215, %v1263
  %v1282 = vadd.f32 %v1217, %v1265
  %v1283 = vadd.f32 %v1219, %v1267
  %v1284 = vmul.f32 %v1268, %v1123
  %v1285 = vmul.f32 %v1269, %v1123
  %v1286 = vmul.f32 %v1270, %v1123
  %v1287 = vmul.f32 %v1271, %v1123
  %v1288 = vmul.f32 %v1272, %v1123
  %v1289 = vmul.f32 %v1273, %v1123
  %v1290 = vmul.f32 %v1274, %v1123
  %v1291 = vmul.f32 %v1275, %v1123
  %v1292 = vmul.f32 %v1276, %v1123
  %v1293 = vmul.f32 %v1277, %v1123
  %v1294 = vmul.f32 %v1278, %v1123
  %v1295 = vmul.f32 %v1279, %v1123
  %v1296 = vmul.f32 %v1280, %v1123
  %v1297 = vmul.f32 %v1281, %v1123
  %v1298 = vmul.f32 %v1282, %v1123
  %v1299 = vmul.f32 %v1283, %v1123
  %v1300 = vadd.f32 %v1284, 1e-05
  %v1301 = vadd.f32 %v1285, 1e-05
  %v1302 = vadd.f32 %v1286, 1e-05
  %v1303 = vadd.f32 %v1287, 1e-05
  %v1304 = vadd.f32 %v1288, 1e-05
  %v1305 = vadd.f32 %v1289, 1e-05
  %v1306 = vadd.f32 %v1290, 1e-05
  %v1307 = vadd.f32 %v1291, 1e-05
  %v1308 = vadd.f32 %v1292, 1e-05
  %v1309 = vadd.f32 %v1293, 1e-05
  %v1310 = vadd.f32 %v1294, 1e-05
  %v1311 = vadd.f32 %v1295, 1e-05
  %v1312 = vadd.f32 %v1296, 1e-05
  %v1313 = vadd.f32 %v1297, 1e-05
  %v1314 = vadd.f32 %v1298, 1e-05
  %v1315 = vadd.f32 %v1299, 1e-05
  %v1316 = vrsqrt.pop %v1300
  %v1317 = vrsqrt.pop %v1301
  %v1318 = vrsqrt.pop %v1302
  %v1319 = vrsqrt.pop %v1303
  %v1320 = vrsqrt.pop %v1304
  %v1321 = vrsqrt.pop %v1305
  %v1322 = vrsqrt.pop %v1306
  %v1323 = vrsqrt.pop %v1307
  %v1324 = vrsqrt.pop %v1308
  %v1325 = vrsqrt.pop %v1309
  %v1326 = vrsqrt.pop %v1310
  %v1327 = vrsqrt.pop %v1311
  %v1328 = vrsqrt.pop %v1312
  %v1329 = vrsqrt.pop %v1313
  %v1330 = vrsqrt.pop %v1314
  %v1331 = vrsqrt.pop %v1315
  %v1332 = vmul.f32 %v1140, %v1316
  %v1333 = vmul.f32 %v1141, %v1317
  %v1334 = vmul.f32 %v1142, %v1318
  %v1335 = vmul.f32 %v1143, %v1319
  %v1336 = vmul.f32 %v1144, %v1320
  %v1337 = vmul.f32 %v1145, %v1321
  %v1338 = vmul.f32 %v1146, %v1322
  %v1339 = vmul.f32 %v1147, %v1323
  %v1340 = vmul.f32 %v1148, %v1324
  %v1341 = vmul.f32 %v1149, %v1325
  %v1342 = vmul.f32 %v1150, %v1326
  %v1343 = vmul.f32 %v1151, %v1327
  %v1344 = vmul.f32 %v1152, %v1328
  %v1345 = vmul.f32 %v1153, %v1329
  %v1346 = vmul.f32 %v1154, %v1330
  %v1347 = vmul.f32 %v1155, %v1331
  %v1348 = vlaneseq
  %v1349 = vshrl.u32 %v1348, 7
  %v1350 = vsub.s32 6, %v1349
  %v1351 = vrot.slane %v86, %v1350
  %v1352 = vmul.f32 %v1332, %v1351
  %v1353 = vmul.f32 %v1333, %v1351
  %v1354 = vmul.f32 %v1334, %v1351
  %v1355 = vmul.f32 %v1335, %v1351
  %v1356 = vmul.f32 %v1336, %v1351
  %v1357 = vmul.f32 %v1337, %v1351
  %v1358 = vmul.f32 %v1338, %v1351
  %v1359 = vmul.f32 %v1339, %v1351
  %v1360 = vmul.f32 %v1340, %v1351
  %v1361 = vmul.f32 %v1341, %v1351
  %v1362 = vmul.f32 %v1342, %v1351
  %v1363 = vmul.f32 %v1343, %v1351
  %v1364 = vmul.f32 %v1344, %v1351
  %v1365 = vmul.f32 %v1345, %v1351
  %v1366 = vmul.f32 %v1346, %v1351
  %v1367 = vmul.f32 %v1347, %v1351
  %v1368 = vlaneseq
  %v1369 = vshrl.u32 %v1368, 7
  %v1370 = vsub.s32 0, %v1369
  %v1371 = vrot.slane %v87, %v1370
  %v1372 = vadd.f32 %v1352, %v1371
  %v1373 = vadd.f32 %v1353, %v1371
  %v1374 = vadd.f32 %v1354, %v1371
  %v1375 = vadd.f32 %v1355, %v1371
  %v1376 = vadd.f32 %v1356, %v1371
  %v1377 = vadd.f32 %v1357, %v1371
  %v1378 = vadd.f32 %v1358, %v1371
  %v1379 = vadd.f32 %v1359, %v1371
  %v1380 = vadd.f32 %v1360, %v1371
  %v1381 = vadd.f32 %v1361, %v1371
  %v1382 = vadd.f32 %v1362, %v1371
  %v1383 = vadd.f32 %v1363, %v1371
  %v1384 = vadd.f32 %v1364, %v1371
  %v1385 = vadd.f32 %v1365, %v1371
  %v1386 = vadd.f32 %v1366, %v1371
  %v1387 = vadd.f32 %v1367, %v1371
  %v1388 = vmul.f32 %v1156, %v1316
  %v1389 = vmul.f32 %v1157, %v1317
  %v1390 = vmul.f32 %v1158, %v1318
  %v1391 = vmul.f32 %v1159, %v1319
  %v1392 = vmul.f32 %v1160, %v1320
  %v1393 = vmul.f32 %v1161, %v1321
  %v1394 = vmul.f32 %v1162, %v1322
  %v1395 = vmul.f32 %v1163, %v1323
  %v1396 = vmul.f32 %v1164, %v1324
  %v1397 = vmul.f32 %v1165, %v1325
  %v1398 = vmul.f32 %v1166, %v1326
  %v1399 = vmul.f32 %v1167, %v1327
  %v1400 = vmul.f32 %v1168, %v1328
  %v1401 = vmul.f32 %v1169, %v1329
  %v1402 = vmul.f32 %v1170, %v1330
  %v1403 = vmul.f32 %v1171, %v1331
  %v1404 = vlaneseq
  %v1405 = vshrl.u32 %v1404, 7
  %v1406 = vsub.s32 7, %v1405
  %v1407 = vrot.slane %v86, %v1406
  %v1408 = vmul.f32 %v1388, %v1407
  %v1409 = vmul.f32 %v1389, %v1407
  %v1410 = vmul.f32 %v1390, %v1407
  %v1411 = vmul.f32 %v1391, %v1407
  %v1412 = vmul.f32 %v1392, %v1407
  %v1413 = vmul.f32 %v1393, %v1407
  %v1414 = vmul.f32 %v1394, %v1407
  %v1415 = vmul.f32 %v1395, %v1407
  %v1416 = vmul.f32 %v1396, %v1407
  %v1417 = vmul.f32 %v1397, %v1407
  %v1418 = vmul.f32 %v1398, %v1407
  %v1419 = vmul.f32 %v1399, %v1407
  %v1420 = vmul.f32 %v1400, %v1407
  %v1421 = vmul.f32 %v1401, %v1407
  %v1422 = vmul.f32 %v1402, %v1407
  %v1423 = vmul.f32 %v1403, %v1407
  %v1424 = vlaneseq
  %v1425 = vshrl.u32 %v1424, 7
  %v1426 = vsub.s32 1, %v1425
  %v1427 = vrot.slane %v87, %v1426
  %v1428 = vadd.f32 %v1408, %v1427
  %v1429 = vadd.f32 %v1409, %v1427
  %v1430 = vadd.f32 %v1410, %v1427
  %v1431 = vadd.f32 %v1411, %v1427
  %v1432 = vadd.f32 %v1412, %v1427
  %v1433 = vadd.f32 %v1413, %v1427
  %v1434 = vadd.f32 %v1414, %v1427
  %v1435 = vadd.f32 %v1415, %v1427
  %v1436 = vadd.f32 %v1416, %v1427
  %v1437 = vadd.f32 %v1417, %v1427
  %v1438 = vadd.f32 %v1418, %v1427
  %v1439 = vadd.f32 %v1419, %v1427
  %v1440 = vadd.f32 %v1420, %v1427
  %v1441 = vadd.f32 %v1421, %v1427
  %v1442 = vadd.f32 %v1422, %v1427
  %v1443 = vadd.f32 %v1423, %v1427
  %1444 = vmatprep.subr.mxu0 0.0
  %1445 = vmatpush1.msra.mxu0 %v136
  %1446 = vmatprep.subr.mxu0 0.0
  %1447 = vmatpush1.msra.mxu0 %v137
  %1448 = vmatprep.subr.mxu0 0.0
  %1449 = vmatpush1.msra.mxu0 %v138
  %1450 = vmatprep.subr.mxu0 0.0
  %1451 = vmatpush1.msra.mxu0 %v139
  %1452 = vmatprep.subr.mxu0 0.0
  %1453 = vmatpush1.msra.mxu0 %v140
  %1454 = vmatprep.subr.mxu0 0.0
  %1455 = vmatpush1.msra.mxu0 %v141
  %1456 = vmatprep.subr.mxu0 0.0
  %1457 = vmatpush1.msra.mxu0 %v142
  %1458 = vmatprep.subr.mxu0 0.0
  %1459 = vmatpush1.msra.mxu0 %v143
  %1460 = vmatprep.subr.mxu0 0.0
  %1461 = vmatpush1.msra.mxu0 %v144
  %1462 = vmatprep.subr.mxu0 0.0
  %1463 = vmatpush1.msra.mxu0 %v145
  %1464 = vmatprep.subr.mxu0 0.0
  %1465 = vmatpush1.msra.mxu0 %v146
  %1466 = vmatprep.subr.mxu0 0.0
  %1467 = vmatpush1.msra.mxu0 %v147
  %1468 = vmatprep.subr.mxu0 0.0
  %1469 = vmatpush1.msra.mxu0 %v148
  %1470 = vmatprep.subr.mxu0 0.0
  %1471 = vmatpush1.msra.mxu0 %v149
  %1472 = vmatprep.subr.mxu0 0.0
  %1473 = vmatpush1.msra.mxu0 %v150
  %1474 = vmatprep.subr.mxu0 0.0
  %1475 = vmatpush1.msra.mxu0 %v151
  %1476 = vmatprep.subr.mxu0 0.0
  %1477 = vmatpush1.msra.mxu0 0.0
  %1478 = vmatprep.subr.mxu0 0.0
  %1479 = vmatpush1.msra.mxu0 0.0
  %1480 = vmatprep.subr.mxu0 0.0
  %1481 = vmatpush1.msra.mxu0 0.0
  %1482 = vmatprep.subr.mxu0 0.0
  %1483 = vmatpush1.msra.mxu0 0.0
  %1484 = vmatprep.subr.mxu0 0.0
  %1485 = vmatpush1.msra.mxu0 0.0
  %1486 = vmatprep.subr.mxu0 0.0
  %1487 = vmatpush1.msra.mxu0 0.0
  %1488 = vmatprep.subr.mxu0 0.0
  %1489 = vmatpush1.msra.mxu0 0.0
  %1490 = vmatprep.subr.mxu0 0.0
  %1491 = vmatpush1.msra.mxu0 0.0
  %1492 = vmatprep.subr.mxu0 0.0
  %1493 = vmatpush1.msra.mxu0 0.0
  %1494 = vmatprep.subr.mxu0 0.0
  %1495 = vmatpush1.msra.mxu0 0.0
  %1496 = vmatprep.subr.mxu0 0.0
  %1497 = vmatpush1.msra.mxu0 0.0
  %1498 = vmatprep.subr.mxu0 0.0
  %1499 = vmatpush1.msra.mxu0 0.0
  %1500 = vmatprep.subr.mxu0 0.0
  %1501 = vmatpush1.msra.mxu0 0.0
  %1502 = vmatprep.subr.mxu0 0.0
  %1503 = vmatpush1.msra.mxu0 0.0
  %1504 = vmatprep.subr.mxu0 0.0
  %1505 = vmatpush1.msra.mxu0 0.0
  %1506 = vmatprep.subr.mxu0 0.0
  %1507 = vmatpush1.msra.mxu0 0.0
  %1508 = vmatprep.mubr.f32.mxu0 0.0
  %1509 = vmatmul.mubr.f32.gmra.mrb[0].mxu0 %v1428
  %v1510 = vpop.f32.mrb[0].mxu0
  %v1511 = vadd.f32 0.0, %v1510
  %v1512 = vpop.f32.mrb[0].mxu0
  %1513 = vmatprep.mubr.f32.mxu0 0.0
  %1514 = vmatmul.mubr.f32.gmra.mrb[0].mxu0 %v1429
  %v1515 = vpop.f32.mrb[0].mxu0
  %v1516 = vadd.f32 0.0, %v1515
  %v1517 = vpop.f32.mrb[0].mxu0
  %1518 = vmatprep.mubr.f32.mxu0 0.0
  %1519 = vmatmul.mubr.f32.gmra.mrb[0].mxu0 %v1430
  %v1520 = vpop.f32.mrb[0].mxu0
  %v1521 = vadd.f32 0.0, %v1520
  %v1522 = vpop.f32.mrb[0].mxu0
  %1523 = vmatprep.mubr.f32.mxu0 0.0
  %1524 = vmatmul.mubr.f32.gmra.mrb[0].mxu0 %v1431
  %v1525 = vpop.f32.mrb[0].mxu0
  %v1526 = vadd.f32 0.0, %v1525
  %v1527 = vpop.f32.mrb[0].mxu0
  %1528 = vmatprep.mubr.f32.mxu0 0.0
  %1529 = vmatmul.mubr.f32.gmra.mrb[0].mxu0 %v1432
  %v1530 = vpop.f32.mrb[0].mxu0
  %v1531 = vadd.f32 0.0, %v1530
  %v1532 = vpop.f32.mrb[0].mxu0
  %1533 = vmatprep.mubr.f32.mxu0 0.0
  %1534 = vmatmul.mubr.f32.gmra.mrb[0].mxu0 %v1433
  %v1535 = vpop.f32.mrb[0].mxu0
  %v1536 = vadd.f32 0.0, %v1535
  %v1537 = vpop.f32.mrb[0].mxu0
  %1538 = vmatprep.mubr.f32.mxu0 0.0
  %1539 = vmatmul.mubr.f32.gmra.mrb[0].mxu0 %v1434
  %v1540 = vpop.f32.mrb[0].mxu0
  %v1541 = vadd.f32 0.0, %v1540
  %v1542 = vpop.f32.mrb[0].mxu0
  %1543 = vmatprep.mubr.f32.mxu0 0.0
  %1544 = vmatmul.mubr.f32.gmra.mrb[0].mxu0 %v1435
  %v1545 = vpop.f32.mrb[0].mxu0
  %v1546 = vadd.f32 0.0, %v1545
  %v1547 = vpop.f32.mrb[0].mxu0
  %1548 = vmatprep.mubr.f32.mxu0 0.0
  %1549 = vmatmul.mubr.f32.gmra.mrb[0].mxu0 %v1436
  %v1550 = vpop.f32.mrb[0].mxu0
  %v1551 = vadd.f32 0.0, %v1550
  %v1552 = vpop.f32.mrb[0].mxu0
  %1553 = vmatprep.mubr.f32.mxu0 0.0
  %1554 = vmatmul.mubr.f32.gmra.mrb[0].mxu0 %v1437
  %v1555 = vpop.f32.mrb[0].mxu0
  %v1556 = vadd.f32 0.0, %v1555
  %v1557 = vpop.f32.mrb[0].mxu0
  %1558 = vmatprep.mubr.f32.mxu0 0.0
  %1559 = vmatmul.mubr.f32.gmra.mrb[0].mxu0 %v1438
  %v1560 = vpop.f32.mrb[0].mxu0
  %v1561 = vadd.f32 0.0, %v1560
  %v1562 = vpop.f32.mrb[0].mxu0
  %1563 = vmatprep.mubr.f32.mxu0 0.0
  %1564 = vmatmul.mubr.f32.gmra.mrb[0].mxu0 %v1439
  %v1565 = vpop.f32.mrb[0].mxu0
  %v1566 = vadd.f32 0.0, %v1565
  %v1567 = vpop.f32.mrb[0].mxu0
  %1568 = vmatprep.mubr.f32.mxu0 0.0
  %1569 = vmatmul.mubr.f32.gmra.mrb[0].mxu0 %v1440
  %v1570 = vpop.f32.mrb[0].mxu0
  %v1571 = vadd.f32 0.0, %v1570
  %v1572 = vpop.f32.mrb[0].mxu0
  %1573 = vmatprep.mubr.f32.mxu0 0.0
  %1574 = vmatmul.mubr.f32.gmra.mrb[0].mxu0 %v1441
  %v1575 = vpop.f32.mrb[0].mxu0
  %v1576 = vadd.f32 0.0, %v1575
  %v1577 = vpop.f32.mrb[0].mxu0
  %1578 = vmatprep.mubr.f32.mxu0 0.0
  %1579 = vmatmul.mubr.f32.gmra.mrb[0].mxu0 %v1442
  %v1580 = vpop.f32.mrb[0].mxu0
  %v1581 = vadd.f32 0.0, %v1580
  %v1582 = vpop.f32.mrb[0].mxu0
  %1583 = vmatprep.mubr.f32.mxu0 0.0
  %1584 = vmatmul.mubr.f32.gmra.mrb[0].mxu0 %v1443
  %v1585 = vpop.f32.mrb[0].mxu0
  %v1586 = vadd.f32 0.0, %v1585
  %v1587 = vpop.f32.mrb[0].mxu0
  %1588 = vdwg.mxu0
  %1589 = vmatprep.subr.mxu0 0.0
  %1590 = vmatpush1.msra.mxu0 %v120
  %1591 = vmatprep.subr.mxu0 0.0
  %1592 = vmatpush1.msra.mxu0 %v121
  %1593 = vmatprep.subr.mxu0 0.0
  %1594 = vmatpush1.msra.mxu0 %v122
  %1595 = vmatprep.subr.mxu0 0.0
  %1596 = vmatpush1.msra.mxu0 %v123
  %1597 = vmatprep.subr.mxu0 0.0
  %1598 = vmatpush1.msra.mxu0 %v124
  %1599 = vmatprep.subr.mxu0 0.0
  %1600 = vmatpush1.msra.mxu0 %v125
  %1601 = vmatprep.subr.mxu0 0.0
  %1602 = vmatpush1.msra.mxu0 %v126
  %1603 = vmatprep.subr.mxu0 0.0
  %1604 = vmatpush1.msra.mxu0 %v127
  %1605 = vmatprep.subr.mxu0 0.0
  %1606 = vmatpush1.msra.mxu0 %v128
  %1607 = vmatprep.subr.mxu0 0.0
  %1608 = vmatpush1.msra.mxu0 %v129
  %1609 = vmatprep.subr.mxu0 0.0
  %1610 = vmatpush1.msra.mxu0 %v130
  %1611 = vmatprep.subr.mxu0 0.0
  %1612 = vmatpush1.msra.mxu0 %v131
  %1613 = vmatprep.subr.mxu0 0.0
  %1614 = vmatpush1.msra.mxu0 %v132
  %1615 = vmatprep.subr.mxu0 0.0
  %1616 = vmatpush1.msra.mxu0 %v133
  %1617 = vmatprep.subr.mxu0 0.0
  %1618 = vmatpush1.msra.mxu0 %v134
  %1619 = vmatprep.subr.mxu0 0.0
  %1620 = vmatpush1.msra.mxu0 %v135
  %1621 = vmatprep.subr.mxu0 0.0
  %1622 = vmatpush1.msra.mxu0 0.0
  %1623 = vmatprep.subr.mxu0 0.0
  %1624 = vmatpush1.msra.mxu0 0.0
  %1625 = vmatprep.subr.mxu0 0.0
  %1626 = vmatpush1.msra.mxu0 0.0
  %1627 = vmatprep.subr.mxu0 0.0
  %1628 = vmatpush1.msra.mxu0 0.0
  %1629 = vmatprep.subr.mxu0 0.0
  %1630 = vmatpush1.msra.mxu0 0.0
  %1631 = vmatprep.subr.mxu0 0.0
  %1632 = vmatpush1.msra.mxu0 0.0
  %1633 = vmatprep.subr.mxu0 0.0
  %1634 = vmatpush1.msra.mxu0 0.0
  %1635 = vmatprep.subr.mxu0 0.0
  %1636 = vmatpush1.msra.mxu0 0.0
  %1637 = vmatprep.subr.mxu0 0.0
  %1638 = vmatpush1.msra.mxu0 0.0
  %1639 = vmatprep.subr.mxu0 0.0
  %1640 = vmatpush1.msra.mxu0 0.0
  %1641 = vmatprep.subr.mxu0 0.0
  %1642 = vmatpush1.msra.mxu0 0.0
  %1643 = vmatprep.subr.mxu0 0.0
  %1644 = vmatpush1.msra.mxu0 0.0
  %1645 = vmatprep.subr.mxu0 0.0
  %1646 = vmatpush1.msra.mxu0 0.0
  %1647 = vmatprep.subr.mxu0 0.0
  %1648 = vmatpush1.msra.mxu0 0.0
  %1649 = vmatprep.subr.mxu0 0.0
  %1650 = vmatpush1.msra.mxu0 0.0
  %1651 = vmatprep.subr.mxu0 0.0
  %1652 = vmatpush1.msra.mxu0 0.0
  %1653 = vmatprep.mubr.f32.mxu0 0.0
  %1654 = vmatmul.mubr.f32.gmra.mrb[0].mxu0 %v1372
  %v1655 = vpop.f32.mrb[0].mxu0
  %v1656 = vadd.f32 %v1511, %v1655
  %v1657 = vpop.f32.mrb[0].mxu0
  %1658 = vmatprep.mubr.f32.mxu0 0.0
  %1659 = vmatmul.mubr.f32.gmra.mrb[0].mxu0 %v1373
  %v1660 = vpop.f32.mrb[0].mxu0
  %v1661 = vadd.f32 %v1516, %v1660
  %v1662 = vpop.f32.mrb[0].mxu0
  %1663 = vmatprep.mubr.f32.mxu0 0.0
  %1664 = vmatmul.mubr.f32.gmra.mrb[0].mxu0 %v1374
  %v1665 = vpop.f32.mrb[0].mxu0
  %v1666 = vadd.f32 %v1521, %v1665
  %v1667 = vpop.f32.mrb[0].mxu0
  %1668 = vmatprep.mubr.f32.mxu0 0.0
  %1669 = vmatmul.mubr.f32.gmra.mrb[0].mxu0 %v1375
  %v1670 = vpop.f32.mrb[0].mxu0
  %v1671 = vadd.f32 %v1526, %v1670
  %v1672 = vpop.f32.mrb[0].mxu0
  %1673 = vmatprep.mubr.f32.mxu0 0.0
  %1674 = vmatmul.mubr.f32.gmra.mrb[0].mxu0 %v1376
  %v1675 = vpop.f32.mrb[0].mxu0
  %v1676 = vadd.f32 %v1531, %v1675
  %v1677 = vpop.f32.mrb[0].mxu0
  %1678 = vmatprep.mubr.f32.mxu0 0.0
  %1679 = vmatmul.mubr.f32.gmra.mrb[0].mxu0 %v1377
  %v1680 = vpop.f32.mrb[0].mxu0
  %v1681 = vadd.f32 %v1536, %v1680
  %v1682 = vpop.f32.mrb[0].mxu0
  %1683 = vmatprep.mubr.f32.mxu0 0.0
  %1684 = vmatmul.mubr.f32.gmra.mrb[0].mxu0 %v1378
  %v1685 = vpop.f32.mrb[0].mxu0
  %v1686 = vadd.f32 %v1541, %v1685
  %v1687 = vpop.f32.mrb[0].mxu0
  %1688 = vmatprep.mubr.f32.mxu0 0.0
  %1689 = vmatmul.mubr.f32.gmra.mrb[0].mxu0 %v1379
  %v1690 = vpop.f32.mrb[0].mxu0
  %v1691 = vadd.f32 %v1546, %v1690
  %v1692 = vpop.f32.mrb[0].mxu0
  %1693 = vmatprep.mubr.f32.mxu0 0.0
  %1694 = vmatmul.mubr.f32.gmra.mrb[0].mxu0 %v1380
  %v1695 = vpop.f32.mrb[0].mxu0
  %v1696 = vadd.f32 %v1551, %v1695
  %v1697 = vpop.f32.mrb[0].mxu0
  %1698 = vmatprep.mubr.f32.mxu0 0.0
  %1699 = vmatmul.mubr.f32.gmra.mrb[0].mxu0 %v1381
  %v1700 = vpop.f32.mrb[0].mxu0
  %v1701 = vadd.f32 %v1556, %v1700
  %v1702 = vpop.f32.mrb[0].mxu0
  %1703 = vmatprep.mubr.f32.mxu0 0.0
  %1704 = vmatmul.mubr.f32.gmra.mrb[0].mxu0 %v1382
  %v1705 = vpop.f32.mrb[0].mxu0
  %v1706 = vadd.f32 %v1561, %v1705
  %v1707 = vpop.f32.mrb[0].mxu0
  %1708 = vmatprep.mubr.f32.mxu0 0.0
  %1709 = vmatmul.mubr.f32.gmra.mrb[0].mxu0 %v1383
  %v1710 = vpop.f32.mrb[0].mxu0
  %v1711 = vadd.f32 %v1566, %v1710
  %v1712 = vpop.f32.mrb[0].mxu0
  %1713 = vmatprep.mubr.f32.mxu0 0.0
  %1714 = vmatmul.mubr.f32.gmra.mrb[0].mxu0 %v1384
  %v1715 = vpop.f32.mrb[0].mxu0
  %v1716 = vadd.f32 %v1571, %v1715
  %v1717 = vpop.f32.mrb[0].mxu0
  %1718 = vmatprep.mubr.f32.mxu0 0.0
  %1719 = vmatmul.mubr.f32.gmra.mrb[0].mxu0 %v1385
  %v1720 = vpop.f32.mrb[0].mxu0
  %v1721 = vadd.f32 %v1576, %v1720
  %v1722 = vpop.f32.mrb[0].mxu0
  %1723 = vmatprep.mubr.f32.mxu0 0.0
  %1724 = vmatmul.mubr.f32.gmra.mrb[0].mxu0 %v1386
  %v1725 = vpop.f32.mrb[0].mxu0
  %v1726 = vadd.f32 %v1581, %v1725
  %v1727 = vpop.f32.mrb[0].mxu0
  %1728 = vmatprep.mubr.f32.mxu0 0.0
  %1729 = vmatmul.mubr.f32.gmra.mrb[0].mxu0 %v1387
  %v1730 = vpop.f32.mrb[0].mxu0
  %v1731 = vadd.f32 %v1586, %v1730
  %v1732 = vpop.f32.mrb[0].mxu0
  %1733 = vdwg.mxu0
  %v1734 = vlaneseq
  %v1735 = vshrl.u32 %v1734, 7
  %v1736 = vsub.s32 2, %v1735
  %v1737 = vrot.slane %v87, %v1736
  %v1738 = vadd.f32 %v1656, %v1737
  %v1739 = vadd.f32 %v1661, %v1737
  %v1740 = vadd.f32 %v1666, %v1737
  %v1741 = vadd.f32 %v1671, %v1737
  %v1742 = vadd.f32 %v1676, %v1737
  %v1743 = vadd.f32 %v1681, %v1737
  %v1744 = vadd.f32 %v1686, %v1737
  %v1745 = vadd.f32 %v1691, %v1737
  %v1746 = vadd.f32 %v1696, %v1737
  %v1747 = vadd.f32 %v1701, %v1737
  %v1748 = vadd.f32 %v1706, %v1737
  %v1749 = vadd.f32 %v1711, %v1737
  %v1750 = vadd.f32 %v1716, %v1737
  %v1751 = vadd.f32 %v1721, %v1737
  %v1752 = vadd.f32 %v1726, %v1737
  %v1753 = vadd.f32 %v1731, %v1737
  %v1754 = vmul.f32 %v1738, 0.5
  %v1755 = vmul.f32 %v1739, 0.5
  %v1756 = vmul.f32 %v1740, 0.5
  %v1757 = vmul.f32 %v1741, 0.5
  %v1758 = vmul.f32 %v1742, 0.5
  %v1759 = vmul.f32 %v1743, 0.5
  %v1760 = vmul.f32 %v1744, 0.5
  %v1761 = vmul.f32 %v1745, 0.5
  %v1762 = vmul.f32 %v1746, 0.5
  %v1763 = vmul.f32 %v1747, 0.5
  %v1764 = vmul.f32 %v1748, 0.5
  %v1765 = vmul.f32 %v1749, 0.5
  %v1766 = vmul.f32 %v1750, 0.5
  %v1767 = vmul.f32 %v1751, 0.5
  %v1768 = vmul.f32 %v1752, 0.5
  %v1769 = vmul.f32 %v1753, 0.5
  %v1770 = vmul.f32 %v1738, 0.70710677
  %v1771 = vmul.f32 %v1739, 0.70710677
  %v1772 = vmul.f32 %v1740, 0.70710677
  %v1773 = vmul.f32 %v1741, 0.70710677
  %v1774 = vmul.f32 %v1742, 0.70710677
  %v1775 = vmul.f32 %v1743, 0.70710677
  %v1776 = vmul.f32 %v1744, 0.70710677
  %v1777 = vmul.f32 %v1745, 0.70710677
  %v1778 = vmul.f32 %v1746, 0.70710677
  %v1779 = vmul.f32 %v1747, 0.70710677
  %v1780 = vmul.f32 %v1748, 0.70710677
  %v1781 = vmul.f32 %v1749, 0.70710677
  %v1782 = vmul.f32 %v1750, 0.70710677
  %v1783 = vmul.f32 %v1751, 0.70710677
  %v1784 = vmul.f32 %v1752, 0.70710677
  %v1785 = vmul.f32 %v1753, 0.70710677
  %v1786 = verf.f32.pop %v1770
  %v1787 = verf.f32.pop %v1771
  %v1788 = verf.f32.pop %v1772
  %v1789 = verf.f32.pop %v1773
  %v1790 = verf.f32.pop %v1774
  %v1791 = verf.f32.pop %v1775
  %v1792 = verf.f32.pop %v1776
  %v1793 = verf.f32.pop %v1777
  %v1794 = verf.f32.pop %v1778
  %v1795 = verf.f32.pop %v1779
  %v1796 = verf.f32.pop %v1780
  %v1797 = verf.f32.pop %v1781
  %v1798 = verf.f32.pop %v1782
  %v1799 = verf.f32.pop %v1783
  %v1800 = verf.f32.pop %v1784
  %v1801 = verf.f32.pop %v1785
  %v1802 = vadd.f32 %v1786, 1.0
  %v1803 = vadd.f32 %v1787, 1.0
  %v1804 = vadd.f32 %v1788, 1.0
  %v1805 = vadd.f32 %v1789, 1.0
  %v1806 = vadd.f32 %v1790, 1.0
  %v1807 = vadd.f32 %v1791, 1.0
  %v1808 = vadd.f32 %v1792, 1.0
  %v1809 = vadd.f32 %v1793, 1.0
  %v1810 = vadd.f32 %v1794, 1.0
  %v1811 = vadd.f32 %v1795, 1.0
  %v1812 = vadd.f32 %v1796, 1.0
  %v1813 = vadd.f32 %v1797, 1.0
  %v1814 = vadd.f32 %v1798, 1.0
  %v1815 = vadd.f32 %v1799, 1.0
  %v1816 = vadd.f32 %v1800, 1.0
  %v1817 = vadd.f32 %v1801, 1.0
  %v1818 = vmul.f32 %v1754, %v1802
  %v1819 = vmul.f32 %v1755, %v1803
  %v1820 = vmul.f32 %v1756, %v1804
  %v1821 = vmul.f32 %v1757, %v1805
  %v1822 = vmul.f32 %v1758, %v1806
  %v1823 = vmul.f32 %v1759, %v1807
  %v1824 = vmul.f32 %v1760, %v1808
  %v1825 = vmul.f32 %v1761, %v1809
  %v1826 = vmul.f32 %v1762, %v1810
  %v1827 = vmul.f32 %v1763, %v1811
  %v1828 = vmul.f32 %v1764, %v1812
  %v1829 = vmul.f32 %v1765, %v1813
  %v1830 = vmul.f32 %v1766, %v1814
  %v1831 = vmul.f32 %v1767, %v1815
  %v1832 = vmul.f32 %v1768, %v1816
  %v1833 = vmul.f32 %v1769, %v1817
  %1834 = vadd.xlane.f32.xlu0 %v1818
  %v1835 = vpop.xlane.xlu0 %1834
  %1836 = vadd.xlane.f32.xlu0 %v1819
  %v1837 = vpop.xlane.xlu0 %1836
  %1838 = vadd.xlane.f32.xlu0 %v1820
  %v1839 = vpop.xlane.xlu0 %1838
  %1840 = vadd.xlane.f32.xlu0 %v1821
  %v1841 = vpop.xlane.xlu0 %1840
  %1842 = vadd.xlane.f32.xlu0 %v1822
  %v1843 = vpop.xlane.xlu0 %1842
  %1844 = vadd.xlane.f32.xlu0 %v1823
  %v1845 = vpop.xlane.xlu0 %1844
  %1846 = vadd.xlane.f32.xlu0 %v1824
  %v1847 = vpop.xlane.xlu0 %1846
  %1848 = vadd.xlane.f32.xlu0 %v1825
  %v1849 = vpop.xlane.xlu0 %1848
  %1850 = vadd.xlane.f32.xlu0 %v1826
  %v1851 = vpop.xlane.xlu0 %1850
  %1852 = vadd.xlane.f32.xlu0 %v1827
  %v1853 = vpop.xlane.xlu0 %1852
  %1854 = vadd.xlane.f32.xlu0 %v1828
  %v1855 = vpop.xlane.xlu0 %1854
  %1856 = vadd.xlane.f32.xlu0 %v1829
  %v1857 = vpop.xlane.xlu0 %1856
  %1858 = vadd.xlane.f32.xlu0 %v1830
  %v1859 = vpop.xlane.xlu0 %1858
  %1860 = vadd.xlane.f32.xlu0 %v1831
  %v1861 = vpop.xlane.xlu0 %1860
  %1862 = vadd.xlane.f32.xlu0 %v1832
  %v1863 = vpop.xlane.xlu0 %1862
  %1864 = vadd.xlane.f32.xlu0 %v1833
  %v1865 = vpop.xlane.xlu0 %1864
  %v1866 = vmul.f32 %v1835, %v184
  %v1867 = vmul.f32 %v1837, %v184
  %v1868 = vmul.f32 %v1839, %v184
  %v1869 = vmul.f32 %v1841, %v184
  %v1870 = vmul.f32 %v1843, %v184
  %v1871 = vmul.f32 %v1845, %v184
  %v1872 = vmul.f32 %v1847, %v184
  %v1873 = vmul.f32 %v1849, %v184
  %v1874 = vmul.f32 %v1851, %v184
  %v1875 = vmul.f32 %v1853, %v184
  %v1876 = vmul.f32 %v1855, %v184
  %v1877 = vmul.f32 %v1857, %v184
  %v1878 = vmul.f32 %v1859, %v184
  %v1879 = vmul.f32 %v1861, %v184
  %v1880 = vmul.f32 %v1863, %v184
  %v1881 = vmul.f32 %v1865, %v184
  %v1882 = vsub.f32 %v1818, %v1866
  %v1883 = vsub.f32 %v1819, %v1867
  %v1884 = vsub.f32 %v1820, %v1868
  %v1885 = vsub.f32 %v1821, %v1869
  %v1886 = vsub.f32 %v1822, %v1870
  %v1887 = vsub.f32 %v1823, %v1871
  %v1888 = vsub.f32 %v1824, %v1872
  %v1889 = vsub.f32 %v1825, %v1873
  %v1890 = vsub.f32 %v1826, %v1874
  %v1891 = vsub.f32 %v1827, %v1875
  %v1892 = vsub.f32 %v1828, %v1876
  %v1893 = vsub.f32 %v1829, %v1877
  %v1894 = vsub.f32 %v1830, %v1878
  %v1895 = vsub.f32 %v1831, %v1879
  %v1896 = vsub.f32 %v1832, %v1880
  %v1897 = vsub.f32 %v1833, %v1881
  %v1898 = vmul.f32 %v1882, %v1882
  %v1899 = vmul.f32 %v1883, %v1883
  %v1900 = vmul.f32 %v1884, %v1884
  %v1901 = vmul.f32 %v1885, %v1885
  %v1902 = vmul.f32 %v1886, %v1886
  %v1903 = vmul.f32 %v1887, %v1887
  %v1904 = vmul.f32 %v1888, %v1888
  %v1905 = vmul.f32 %v1889, %v1889
  %v1906 = vmul.f32 %v1890, %v1890
  %v1907 = vmul.f32 %v1891, %v1891
  %v1908 = vmul.f32 %v1892, %v1892
  %v1909 = vmul.f32 %v1893, %v1893
  %v1910 = vmul.f32 %v1894, %v1894
  %v1911 = vmul.f32 %v1895, %v1895
  %v1912 = vmul.f32 %v1896, %v1896
  %v1913 = vmul.f32 %v1897, %v1897
  %1914 = vadd.xlane.f32.xlu0 %v1898
  %v1915 = vpop.xlane.xlu0 %1914
  %1916 = vadd.xlane.f32.xlu0 %v1899
  %v1917 = vpop.xlane.xlu0 %1916
  %1918 = vadd.xlane.f32.xlu0 %v1900
  %v1919 = vpop.xlane.xlu0 %1918
  %1920 = vadd.xlane.f32.xlu0 %v1901
  %v1921 = vpop.xlane.xlu0 %1920
  %1922 = vadd.xlane.f32.xlu0 %v1902
  %v1923 = vpop.xlane.xlu0 %1922
  %1924 = vadd.xlane.f32.xlu0 %v1903
  %v1925 = vpop.xlane.xlu0 %1924
  %1926 = vadd.xlane.f32.xlu0 %v1904
  %v1927 = vpop.xlane.xlu0 %1926
  %1928 = vadd.xlane.f32.xlu0 %v1905
  %v1929 = vpop.xlane.xlu0 %1928
  %1930 = vadd.xlane.f32.xlu0 %v1906
  %v1931 = vpop.xlane.xlu0 %1930
  %1932 = vadd.xlane.f32.xlu0 %v1907
  %v1933 = vpop.xlane.xlu0 %1932
  %1934 = vadd.xlane.f32.xlu0 %v1908
  %v1935 = vpop.xlane.xlu0 %1934
  %1936 = vadd.xlane.f32.xlu0 %v1909
  %v1937 = vpop.xlane.xlu0 %1936
  %1938 = vadd.xlane.f32.xlu0 %v1910
  %v1939 = vpop.xlane.xlu0 %1938
  %1940 = vadd.xlane.f32.xlu0 %v1911
  %v1941 = vpop.xlane.xlu0 %1940
  %1942 = vadd.xlane.f32.xlu0 %v1912
  %v1943 = vpop.xlane.xlu0 %1942
  %1944 = vadd.xlane.f32.xlu0 %v1913
  %v1945 = vpop.xlane.xlu0 %1944
  %v1946 = vmul.f32 %v1915, %v184
  %v1947 = vmul.f32 %v1917, %v184
  %v1948 = vmul.f32 %v1919, %v184
  %v1949 = vmul.f32 %v1921, %v184
  %v1950 = vmul.f32 %v1923, %v184
  %v1951 = vmul.f32 %v1925, %v184
  %v1952 = vmul.f32 %v1927, %v184
  %v1953 = vmul.f32 %v1929, %v184
  %v1954 = vmul.f32 %v1931, %v184
  %v1955 = vmul.f32 %v1933, %v184
  %v1956 = vmul.f32 %v1935, %v184
  %v1957 = vmul.f32 %v1937, %v184
  %v1958 = vmul.f32 %v1939, %v184
  %v1959 = vmul.f32 %v1941, %v184
  %v1960 = vmul.f32 %v1943, %v184
  %v1961 = vmul.f32 %v1945, %v184
  %v1962 = vadd.f32 %v1946, 1e-05
  %v1963 = vadd.f32 %v1947, 1e-05
  %v1964 = vadd.f32 %v1948, 1e-05
  %v1965 = vadd.f32 %v1949, 1e-05
  %v1966 = vadd.f32 %v1950, 1e-05
  %v1967 = vadd.f32 %v1951, 1e-05
  %v1968 = vadd.f32 %v1952, 1e-05
  %v1969 = vadd.f32 %v1953, 1e-05
  %v1970 = vadd.f32 %v1954, 1e-05
  %v1971 = vadd.f32 %v1955, 1e-05
  %v1972 = vadd.f32 %v1956, 1e-05
  %v1973 = vadd.f32 %v1957, 1e-05
  %v1974 = vadd.f32 %v1958, 1e-05
  %v1975 = vadd.f32 %v1959, 1e-05
  %v1976 = vadd.f32 %v1960, 1e-05
  %v1977 = vadd.f32 %v1961, 1e-05
  %v1978 = vrsqrt.pop %v1962
  %v1979 = vrsqrt.pop %v1963
  %v1980 = vrsqrt.pop %v1964
  %v1981 = vrsqrt.pop %v1965
  %v1982 = vrsqrt.pop %v1966
  %v1983 = vrsqrt.pop %v1967
  %v1984 = vrsqrt.pop %v1968
  %v1985 = vrsqrt.pop %v1969
  %v1986 = vrsqrt.pop %v1970
  %v1987 = vrsqrt.pop %v1971
  %v1988 = vrsqrt.pop %v1972
  %v1989 = vrsqrt.pop %v1973
  %v1990 = vrsqrt.pop %v1974
  %v1991 = vrsqrt.pop %v1975
  %v1992 = vrsqrt.pop %v1976
  %v1993 = vrsqrt.pop %v1977
  %v1994 = vmul.f32 %v1882, %v1978
  %v1995 = vmul.f32 %v1883, %v1979
  %v1996 = vmul.f32 %v1884, %v1980
  %v1997 = vmul.f32 %v1885, %v1981
  %v1998 = vmul.f32 %v1886, %v1982
  %v1999 = vmul.f32 %v1887, %v1983
  %v2000 = vmul.f32 %v1888, %v1984
  %v2001 = vmul.f32 %v1889, %v1985
  %v2002 = vmul.f32 %v1890, %v1986
  %v2003 = vmul.f32 %v1891, %v1987
  %v2004 = vmul.f32 %v1892, %v1988
  %v2005 = vmul.f32 %v1893, %v1989
  %v2006 = vmul.f32 %v1894, %v1990
  %v2007 = vmul.f32 %v1895, %v1991
  %v2008 = vmul.f32 %v1896, %v1992
  %v2009 = vmul.f32 %v1897, %v1993
  %v2010 = vlaneseq
  %v2011 = vshrl.u32 %v2010, 7
  %v2012 = vsub.s32 3, %v2011
  %v2013 = vrot.slane %v87, %v2012
  %v2014 = vmul.f32 %v1994, %v2013
  %v2015 = vmul.f32 %v1995, %v2013
  %v2016 = vmul.f32 %v1996, %v2013
  %v2017 = vmul.f32 %v1997, %v2013
  %v2018 = vmul.f32 %v1998, %v2013
  %v2019 = vmul.f32 %v1999, %v2013
  %v2020 = vmul.f32 %v2000, %v2013
  %v2021 = vmul.f32 %v2001, %v2013
  %v2022 = vmul.f32 %v2002, %v2013
  %v2023 = vmul.f32 %v2003, %v2013
  %v2024 = vmul.f32 %v2004, %v2013
  %v2025 = vmul.f32 %v2005, %v2013
  %v2026 = vmul.f32 %v2006, %v2013
  %v2027 = vmul.f32 %v2007, %v2013
  %v2028 = vmul.f32 %v2008, %v2013
  %v2029 = vmul.f32 %v2009, %v2013
  %v2030 = vlaneseq
  %v2031 = vshrl.u32 %v2030, 7
  %v2032 = vsub.s32 4, %v2031
  %v2033 = vrot.slane %v87, %v2032
  %v2034 = vadd.f32 %v2014, %v2033
  %v2035 = vadd.f32 %v2015, %v2033
  %v2036 = vadd.f32 %v2016, %v2033
  %v2037 = vadd.f32 %v2017, %v2033
  %v2038 = vadd.f32 %v2018, %v2033
  %v2039 = vadd.f32 %v2019, %v2033
  %v2040 = vadd.f32 %v2020, %v2033
  %v2041 = vadd.f32 %v2021, %v2033
  %v2042 = vadd.f32 %v2022, %v2033
  %v2043 = vadd.f32 %v2023, %v2033
  %v2044 = vadd.f32 %v2024, %v2033
  %v2045 = vadd.f32 %v2025, %v2033
  %v2046 = vadd.f32 %v2026, %v2033
  %v2047 = vadd.f32 %v2027, %v2033
  %v2048 = vadd.f32 %v2028, %v2033
  %v2049 = vadd.f32 %v2029, %v2033
  %v2050 = vld [vmem:[#allocation2] sm:$0x1]
  %2052 = vset.pattern.permute.xlu0 0
  %2053 = vperm.xlu0 %2052, %v2050
  %v2054 = vpop.permute.xlu0 %2053
  %v2056 = vlaneseq
  %v2057 = vshrl.u32 %v2056, 7
  %v2058 = vsub.s32 0, %v2057
  %v2059 = vrot.slane %v2054, %v2058
  %v2061 = vrot.slane %v87, 5
  %2063 = vmatprep.subr.mxu0 0.0
  %2064 = vmatpush1.xpose.msra.mxu0 %v2034
  %2065 = vmatprep.subr.mxu0 0.0
  %2066 = vmatpush1.xpose.msra.mxu0 %v2035
  %2067 = vmatprep.subr.mxu0 0.0
  %2068 = vmatpush1.xpose.msra.mxu0 %v2036
  %2069 = vmatprep.subr.mxu0 0.0
  %2070 = vmatpush1.xpose.msra.mxu0 %v2037
  %2071 = vmatprep.subr.mxu0 0.0
  %2072 = vmatpush1.xpose.msra.mxu0 %v2038
  %2073 = vmatprep.subr.mxu0 0.0
  %2074 = vmatpush1.xpose.msra.mxu0 %v2039
  %2075 = vmatprep.subr.mxu0 0.0
  %2076 = vmatpush1.xpose.msra.mxu0 %v2040
  %2077 = vmatprep.subr.mxu0 0.0
  %2078 = vmatpush1.xpose.msra.mxu0 %v2041
  %2079 = vmatprep.subr.mxu0 0.0
  %2080 = vmatpush1.xpose.msra.mxu0 %v2042
  %2081 = vmatprep.subr.mxu0 0.0
  %2082 = vmatpush1.xpose.msra.mxu0 %v2043
  %2083 = vmatprep.subr.mxu0 0.0
  %2084 = vmatpush1.xpose.msra.mxu0 %v2044
  %2085 = vmatprep.subr.mxu0 0.0
  %2086 = vmatpush1.xpose.msra.mxu0 %v2045
  %2087 = vmatprep.subr.mxu0 0.0
  %2088 = vmatpush1.xpose.msra.mxu0 %v2046
  %2089 = vmatprep.subr.mxu0 0.0
  %2090 = vmatpush1.xpose.msra.mxu0 %v2047
  %2091 = vmatprep.subr.mxu0 0.0
  %2092 = vmatpush1.xpose.msra.mxu0 %v2048
  %2093 = vmatprep.subr.mxu0 0.0
  %2094 = vmatpush1.xpose.msra.mxu0 %v2049
  %2095 = vmatprep.subr.mxu0 0.0
  %2096 = vmatpush1.xpose.msra.mxu0 0.0
  %2097 = vmatprep.subr.mxu0 0.0
  %2098 = vmatpush1.xpose.msra.mxu0 0.0
  %2099 = vmatprep.subr.mxu0 0.0
  %2100 = vmatpush1.xpose.msra.mxu0 0.0
  %2101 = vmatprep.subr.mxu0 0.0
  %2102 = vmatpush1.xpose.msra.mxu0 0.0
  %2103 = vmatprep.subr.mxu0 0.0
  %2104 = vmatpush1.xpose.msra.mxu0 0.0
  %2105 = vmatprep.subr.mxu0 0.0
  %2106 = vmatpush1.xpose.msra.mxu0 0.0
  %2107 = vmatprep.subr.mxu0 0.0
  %2108 = vmatpush1.xpose.msra.mxu0 0.0
  %2109 = vmatprep.subr.mxu0 0.0
  %2110 = vmatpush1.xpose.msra.mxu0 0.0
  %2111 = vmatprep.subr.mxu0 0.0
  %2112 = vmatpush1.xpose.msra.mxu0 0.0
  %2113 = vmatprep.subr.mxu0 0.0
  %2114 = vmatpush1.xpose.msra.mxu0 0.0
  %2115 = vmatprep.subr.mxu0 0.0
  %2116 = vmatpush1.xpose.msra.mxu0 0.0
  %2117 = vmatprep.subr.mxu0 0.0
  %2118 = vmatpush1.xpose.msra.mxu0 0.0
  %2119 = vmatprep.subr.mxu0 0.0
  %2120 = vmatpush1.xpose.msra.mxu0 0.0
  %2121 = vmatprep.subr.mxu0 0.0
  %2122 = vmatpush1.xpose.msra.mxu0 0.0
  %2123 = vmatprep.subr.mxu0 0.0
  %2124 = vmatpush1.xpose.msra.mxu0 0.0
  %2125 = vmatprep.subr.mxu0 0.0
  %2126 = vmatpush1.xpose.msra.mxu0 0.0
  %2127 = vmatprep.mubr.f32.mxu0 0.0
  %2128 = vmatmul.mubr.f32.gmra.mrb[0].mxu0 %v2061
  %v2129 = vpop.f32.mrb[0].mxu0
  %v2130 = vadd.f32 %v2059, %v2129
  %v2131 = vpop.f32.mrb[0].mxu0
  %2132 = vdwg.mxu0
  %2133 = vst [vmem:[%s5] sm:$0x1] %v2130
  // Predicated region
  $region22: #{mlp_model_forward.1} parent=0 // pred_check
    _
  $region23: #{mlp_model_forward.1} parent=0 // pred_check_branch
    %2135 = sbr.rel (0) target = $region25
  $region24: #{mlp_model_forward.1} parent=0 // pred_region
    _
  $region25: #{mlp_model_forward.1} parent=0 // pred_fallthru
    _
  // Predicated region
  $region26: #{mlp_model_forward.1} parent=0 // pred_check
    _
  $region27: #{mlp_model_forward.1} parent=0 // pred_check_branch
    %2137 = sbr.rel (0) target = $region29
  $region28: #{mlp_model_forward.1} parent=0 // pred_region
    _
  $region29: #{mlp_model_forward.1} parent=0 // pred_fallthru
    _

</llo_original>
